<compile_context>
chip_gen: v7x
topology: tpu7x:2x2x1
jax: 0.10.0
libtpu: 0.0.40
codegen_flags: <defaults>
</compile_context>

<pallas_src>
import functools
import math

import jax
import jax.numpy as jnp
from jax.experimental import pallas as pl
from jax.experimental.pallas import tpu as pltpu


def _round_up(x, m):
    return (x + m - 1) // m * m


def _gelu_tanh(x):
    # tanh-approximate GELU (same formula used in kernel and reference).
    # TODO(synk): PyTorch nn.GELU() default is erf-exact; erf has no guaranteed
    # Mosaic lowering, so the tanh approximation is used here.
    c = 0.7978845608028654  # sqrt(2/pi)
    return 0.5 * x * (1.0 + jnp.tanh(c * (x + 0.044715 * x * x * x)))


def _attn_kernel(xq_ref, xk_ref, xv_ref,
                 wq_ref, bq_ref, wk_ref, bk_ref, wv_ref, bv_ref,
                 w1_ref, b1_ref, w2_ref, b2_ref, w3_ref, b3_ref,
                 o_ref, attn_ref, *, heads, head_dim):
    f32 = jnp.float32
    d = head_dim
    scale = 1.0 / math.sqrt(d)

    # --- QKV projections (weights are grid-invariant / VMEM-resident) ---
    qt = jnp.dot(xq_ref[...].astype(f32), wq_ref[...].astype(f32),
                 preferred_element_type=f32) + bq_ref[...].astype(f32)
    kt = jnp.dot(xk_ref[...].astype(f32), wk_ref[...].astype(f32),
                 preferred_element_type=f32) + bk_ref[...].astype(f32)
    vt = jnp.dot(xv_ref[...].astype(f32), wv_ref[...].astype(f32),
                 preferred_element_type=f32) + bv_ref[...].astype(f32)

    # Fold the SDPA scale into Q once (cheaper than scaling every score pair).
    qt = qt * scale

    # --- Scaled dot-product attention, per row, over the head axis ---
    # (mirrors the module calling SDPA on [B, S, H, D]: heads attend to each
    #  other inside every (batch, seq) position). H is tiny, so per-pair
    #  elementwise-mul + lane reduction on 2-D (tile, D) slices beats a 3-D
    #  reshape/einsum, which would force lane relayouts.
    for h in range(heads):
        qh = qt[:, h * d:(h + 1) * d]
        scores = []
        for g in range(heads):
            kg = kt[:, g * d:(g + 1) * d]
            scores.append(jnp.sum(qh * kg, axis=-1, keepdims=True))
        m = scores[0]
        for g in range(1, heads):
            m = jnp.maximum(m, scores[g])
        exps = [jnp.exp(s - m) for s in scores]
        denom = exps[0]
        for g in range(1, heads):
            denom = denom + exps[g]
        inv = 1.0 / denom
        out_h = (exps[0] * inv) * vt[:, 0:d]
        for g in range(1, heads):
            out_h = out_h + (exps[g] * inv) * vt[:, g * d:(g + 1) * d]
        attn_ref[:, h * d:(h + 1) * d] = out_h

    a = attn_ref[...]
    # TODO(synk): module's `normalization` defaults to identity (None path);
    # insert a LayerNorm on `a` here if the module is configured with one.

    # --- LowOrderMLP(in=H*D, hidden_layers=1, hidden=4*H*D, out=D), GELU ---
    h1 = _gelu_tanh(jnp.dot(a, w1_ref[...].astype(f32),
                            preferred_element_type=f32) + b1_ref[...].astype(f32))
    h2 = _gelu_tanh(jnp.dot(h1, w2_ref[...].astype(f32),
                            preferred_element_type=f32) + b2_ref[...].astype(f32))
    out = jnp.dot(h2, w3_ref[...].astype(f32),
                  preferred_element_type=f32) + b3_ref[...].astype(f32)
    o_ref[...] = out.astype(o_ref.dtype)


@functools.partial(jax.jit, static_argnames=("heads", "out_dim", "tile_rows"))
def high_order_attention(query, key, value, params, *, heads, out_dim,
                         tile_rows=512):
    B, S, E = query.shape
    N = B * S
    D = out_dim
    HD = heads * D

    # Lane-dense output: zero-pad the final projection to a multiple of 128
    # columns so output stores are unmasked; the pad is sliced off below.
    Dp = _round_up(D, 128)
    w3, b3 = params["w3"], params["b3"]
    if Dp != D:
        w3 = jnp.pad(w3, ((0, 0), (0, Dp - D)))
        b3 = jnp.pad(b3, ((0, Dp - D),))

    # Row tile: large, a multiple of the dtype's sublane packing, never bigger
    # than the (padded) row count. Rows are zero-padded (no divisibility assert).
    sub = {4: 8, 2: 16, 1: 32}.get(jnp.dtype(query.dtype).itemsize, 8)
    tile = max(sub, min(tile_rows, _round_up(N, sub)))
    tile = _round_up(tile, sub)
    Np = _round_up(N, tile)

    def rows(x):
        x2 = x.reshape(N, E)
        if Np != N:
            x2 = jnp.pad(x2, ((0, Np - N), (0, 0)))
        return x2

    q2, k2, v2 = rows(query), rows(key), rows(value)

    def vec(b):
        return b.reshape(1, -1)

    weights = (params["wq"], vec(params["bq"]),
               params["wk"], vec(params["bk"]),
               params["wv"], vec(params["bv"]),
               params["w1"], vec(params["b1"]),
               params["w2"], vec(params["b2"]),
               w3, vec(b3))

    row_spec = pl.BlockSpec((tile, E), lambda i: (i, 0))
    # Constant index_map -> copied into VMEM once, resident for the whole grid.
    const_specs = [pl.BlockSpec(w.shape, lambda i: (0, 0)) for w in weights]

    grid = (Np // tile,)
    kernel = functools.partial(_attn_kernel, heads=heads, head_dim=D)

    out = pl.pallas_call(
        kernel,
        out_shape=jax.ShapeDtypeStruct((Np, Dp), query.dtype),
        grid_spec=pltpu.PrefetchScalarGridSpec(
            num_scalar_prefetch=0,
            grid=grid,
            in_specs=[row_spec, row_spec, row_spec] + const_specs,
            out_specs=pl.BlockSpec((tile, Dp), lambda i: (i, 0)),
            scratch_shapes=[pltpu.VMEM((tile, HD), jnp.float32)],
        ),
        compiler_params=pltpu.CompilerParams(
            # "parallel": lets v7x shard row tiles across both TensorCores.
            dimension_semantics=("parallel",),
            # > v5e's 16 MiB default scoped limit, < v7x's 64 MiB physical VMEM.
            vmem_limit_bytes=48 * 1024 * 1024,
        ),
    )(q2, k2, v2, *weights)

    return out[:N, :D].reshape(B, S, D)


def _reference(query, key, value, params, *, heads, out_dim):
    """Pure-JAX reference mirroring the PyTorch forward (f32, highest precision)."""
    hp = jax.lax.Precision.HIGHEST
    B, S, E = query.shape
    N = B * S

    def lin(x, w, b):
        return jnp.dot(x, w, precision=hp) + b

    qt = lin(query.reshape(N, E), params["wq"], params["bq"])
    kt = lin(key.reshape(N, E), params["wk"], params["bk"])
    vt = lin(value.reshape(N, E), params["wv"], params["bv"])
    q3 = qt.reshape(N, heads, out_dim)
    k3 = kt.reshape(N, heads, out_dim)
    v3 = vt.reshape(N, heads, out_dim)
    s = jnp.einsum("nhd,ngd->nhg", q3, k3, precision=hp) / jnp.sqrt(
        jnp.float32(out_dim))
    p = jax.nn.softmax(s, axis=-1)
    attn = jnp.einsum("nhg,ngd->nhd", p, v3,
                      precision=hp).reshape(N, heads * out_dim)
    h1 = _gelu_tanh(lin(attn, params["w1"], params["b1"]))
    h2 = _gelu_tanh(lin(h1, params["w2"], params["b2"]))
    out = lin(h2, params["w3"], params["b3"])
    return out.reshape(B, S, out_dim)


if __name__ == "__main__":
    B, S, E = 2, 8, 32          # [batch, sequence, embedding]
    D, H = 32, 4                # out_dim, heads
    HD, HID = H * D, 4 * H * D  # projected width, MLP hidden width

    root = jax.random.PRNGKey(0)
    ks = jax.random.split(root, 16)

    def init(k, shape, fan_in):
        return jax.random.normal(k, shape, jnp.float32) / jnp.sqrt(
            jnp.float32(fan_in))

    params = {
        "wq": init(ks[0], (E, HD), E),      "bq": init(ks[1], (HD,), E),
        "wk": init(ks[2], (E, HD), E),      "bk": init(ks[3], (HD,), E),
        "wv": init(ks[4], (E, HD), E),      "bv": init(ks[5], (HD,), E),
        "w1": init(ks[6], (HD, HID), HD),   "b1": init(ks[7], (HID,), HD),
        "w2": init(ks[8], (HID, HID), HID), "b2": init(ks[9], (HID,), HID),
        "w3": init(ks[10], (HID, D), HID),  "b3": init(ks[11], (D,), HID),
    }

    query = jax.random.normal(ks[12], (B, S, E), jnp.float32)
    key = jax.random.normal(ks[13], (B, S, E), jnp.float32)
    value = jax.random.normal(ks[14], (B, S, E), jnp.float32)

    out = high_order_attention(query, key, value, params, heads=H, out_dim=D)
    out = jax.block_until_ready(out)

    ref = _reference(query, key, value, params, heads=H, out_dim=D)
    assert out.shape == (B, S, D)
    assert jnp.allclose(out, ref, atol=1e-3, rtol=1e-3), (
        "max abs err = %f" % float(jnp.max(jnp.abs(out - ref))))

    print("KERNEL_OK")
</pallas_src>

<mosaic_0001>
module attributes {stable_mosaic.version = 11 : i64} {
  func.func @_attn_kernel(%arg0: i32, %arg1: memref<16x32xf32, #tpu.memory_space<vmem>>, %arg2: memref<16x32xf32, #tpu.memory_space<vmem>>, %arg3: memref<16x32xf32, #tpu.memory_space<vmem>>, %arg4: memref<32x128xf32, #tpu.memory_space<vmem>>, %arg5: memref<1x128xf32, #tpu.memory_space<vmem>>, %arg6: memref<32x128xf32, #tpu.memory_space<vmem>>, %arg7: memref<1x128xf32, #tpu.memory_space<vmem>>, %arg8: memref<32x128xf32, #tpu.memory_space<vmem>>, %arg9: memref<1x128xf32, #tpu.memory_space<vmem>>, %arg10: memref<128x512xf32, #tpu.memory_space<vmem>>, %arg11: memref<1x512xf32, #tpu.memory_space<vmem>>, %arg12: memref<512x512xf32, #tpu.memory_space<vmem>>, %arg13: memref<1x512xf32, #tpu.memory_space<vmem>>, %arg14: memref<512x128xf32, #tpu.memory_space<vmem>>, %arg15: memref<1x128xf32, #tpu.memory_space<vmem>>, %arg16: memref<16x128xf32, #tpu.memory_space<vmem>>, %arg17: memref<16x128xf32, #tpu.memory_space<vmem>>) attributes {dimension_semantics = [#tpu.dimension_semantics<parallel>], iteration_bounds = array<i64: 1>, scalar_prefetch = 0 : i64, scratch_operands = 1 : i64, tpu.core_type = #tpu.core_type<tc>, window_params = [{transform_indices = @transform_0, window_bounds = array<i64: 16, 32>}, {transform_indices = @transform_1, window_bounds = array<i64: 16, 32>}, {transform_indices = @transform_2, window_bounds = array<i64: 16, 32>}, {pipeline_mode = #tpu.pipeline_mode<synchronous>, transform_indices = @transform_3, window_bounds = array<i64: 32, 128>}, {pipeline_mode = #tpu.pipeline_mode<synchronous>, transform_indices = @transform_4, window_bounds = array<i64: 1, 128>}, {pipeline_mode = #tpu.pipeline_mode<synchronous>, transform_indices = @transform_5, window_bounds = array<i64: 32, 128>}, {pipeline_mode = #tpu.pipeline_mode<synchronous>, transform_indices = @transform_6, window_bounds = array<i64: 1, 128>}, {pipeline_mode = #tpu.pipeline_mode<synchronous>, transform_indices = @transform_7, window_bounds = array<i64: 32, 128>}, {pipeline_mode = #tpu.pipeline_mode<synchronous>, transform_indices = @transform_8, window_bounds = array<i64: 1, 128>}, {pipeline_mode = #tpu.pipeline_mode<synchronous>, transform_indices = @transform_9, window_bounds = array<i64: 128, 512>}, {pipeline_mode = #tpu.pipeline_mode<synchronous>, transform_indices = @transform_10, window_bounds = array<i64: 1, 512>}, {pipeline_mode = #tpu.pipeline_mode<synchronous>, transform_indices = @transform_11, window_bounds = array<i64: 512, 512>}, {pipeline_mode = #tpu.pipeline_mode<synchronous>, transform_indices = @transform_12, window_bounds = array<i64: 1, 512>}, {pipeline_mode = #tpu.pipeline_mode<synchronous>, transform_indices = @transform_13, window_bounds = array<i64: 512, 128>}, {pipeline_mode = #tpu.pipeline_mode<synchronous>, transform_indices = @transform_14, window_bounds = array<i64: 1, 128>}, {transform_indices = @transform_15, window_bounds = array<i64: 16, 128>}]} {
    %c0 = arith.constant 0 : index
    %c0_0 = arith.constant 0 : index
    %0 = vector.load %arg1[%c0, %c0_0] : memref<16x32xf32, #tpu.memory_space<vmem>>, vector<16x32xf32>
    %c0_1 = arith.constant 0 : index
    %c0_2 = arith.constant 0 : index
    %1 = vector.load %arg4[%c0_1, %c0_2] : memref<32x128xf32, #tpu.memory_space<vmem>>, vector<32x128xf32>
    %cst = arith.constant dense<0.000000e+00> : vector<16x128xf32>
    %2 = tpu.matmul %0, %1, %cst {dimension_numbers = #tpu.dot_dimension_numbers<[1], [0], [0], [1], [0, 0, 1, 1], [], []>} : vector<16x32xf32>, vector<32x128xf32>, vector<16x128xf32> -> vector<16x128xf32>
    %c0_3 = arith.constant 0 : index
    %c0_4 = arith.constant 0 : index
    %3 = vector.load %arg5[%c0_3, %c0_4] : memref<1x128xf32, #tpu.memory_space<vmem>>, vector<1x128xf32>
    %4 = vector.broadcast %3 : vector<1x128xf32> to vector<16x128xf32>
    %5 = arith.addf %2, %4 : vector<16x128xf32>
    %c0_5 = arith.constant 0 : index
    %c0_6 = arith.constant 0 : index
    %6 = vector.load %arg2[%c0_5, %c0_6] : memref<16x32xf32, #tpu.memory_space<vmem>>, vector<16x32xf32>
    %c0_7 = arith.constant 0 : index
    %c0_8 = arith.constant 0 : index
    %7 = vector.load %arg6[%c0_7, %c0_8] : memref<32x128xf32, #tpu.memory_space<vmem>>, vector<32x128xf32>
    %cst_9 = arith.constant dense<0.000000e+00> : vector<16x128xf32>
    %8 = tpu.matmul %6, %7, %cst_9 {dimension_numbers = #tpu.dot_dimension_numbers<[1], [0], [0], [1], [0, 0, 1, 1], [], []>} : vector<16x32xf32>, vector<32x128xf32>, vector<16x128xf32> -> vector<16x128xf32>
    %c0_10 = arith.constant 0 : index
    %c0_11 = arith.constant 0 : index
    %9 = vector.load %arg7[%c0_10, %c0_11] : memref<1x128xf32, #tpu.memory_space<vmem>>, vector<1x128xf32>
    %10 = vector.broadcast %9 : vector<1x128xf32> to vector<16x128xf32>
    %11 = arith.addf %8, %10 : vector<16x128xf32>
    %c0_12 = arith.constant 0 : index
    %c0_13 = arith.constant 0 : index
    %12 = vector.load %arg3[%c0_12, %c0_13] : memref<16x32xf32, #tpu.memory_space<vmem>>, vector<16x32xf32>
    %c0_14 = arith.constant 0 : index
    %c0_15 = arith.constant 0 : index
    %13 = vector.load %arg8[%c0_14, %c0_15] : memref<32x128xf32, #tpu.memory_space<vmem>>, vector<32x128xf32>
    %cst_16 = arith.constant dense<0.000000e+00> : vector<16x128xf32>
    %14 = tpu.matmul %12, %13, %cst_16 {dimension_numbers = #tpu.dot_dimension_numbers<[1], [0], [0], [1], [0, 0, 1, 1], [], []>} : vector<16x32xf32>, vector<32x128xf32>, vector<16x128xf32> -> vector<16x128xf32>
    %c0_17 = arith.constant 0 : index
    %c0_18 = arith.constant 0 : index
    %15 = vector.load %arg9[%c0_17, %c0_18] : memref<1x128xf32, #tpu.memory_space<vmem>>, vector<1x128xf32>
    %16 = vector.broadcast %15 : vector<1x128xf32> to vector<16x128xf32>
    %17 = arith.addf %14, %16 : vector<16x128xf32>
    %cst_19 = arith.constant 0.176776692 : f32
    %18 = vector.broadcast %cst_19 : f32 to vector<16x128xf32>
    %19 = arith.mulf %5, %18 : vector<16x128xf32>
    %20 = vector.extract_strided_slice %19 {offsets = [0, 0], sizes = [16, 32], strides = [1, 1]} : vector<16x128xf32> to vector<16x32xf32>
    %21 = vector.extract_strided_slice %11 {offsets = [0, 0], sizes = [16, 32], strides = [1, 1]} : vector<16x128xf32> to vector<16x32xf32>
    %22 = arith.mulf %20, %21 : vector<16x32xf32>
    %cst_20 = arith.constant dense<0.000000e+00> : vector<16xf32>
    %23 = vector.multi_reduction <add>, %22, %cst_20 [1] : vector<16x32xf32> to vector<16xf32>
    %24 = vector.shape_cast %23 : vector<16xf32> to vector<16x1xf32>
    %25 = vector.extract_strided_slice %11 {offsets = [0, 32], sizes = [16, 32], strides = [1, 1]} : vector<16x128xf32> to vector<16x32xf32>
    %26 = arith.mulf %20, %25 : vector<16x32xf32>
    %cst_21 = arith.constant dense<0.000000e+00> : vector<16xf32>
    %27 = vector.multi_reduction <add>, %26, %cst_21 [1] : vector<16x32xf32> to vector<16xf32>
    %28 = vector.shape_cast %27 : vector<16xf32> to vector<16x1xf32>
    %29 = vector.extract_strided_slice %11 {offsets = [0, 64], sizes = [16, 32], strides = [1, 1]} : vector<16x128xf32> to vector<16x32xf32>
    %30 = arith.mulf %20, %29 : vector<16x32xf32>
    %cst_22 = arith.constant dense<0.000000e+00> : vector<16xf32>
    %31 = vector.multi_reduction <add>, %30, %cst_22 [1] : vector<16x32xf32> to vector<16xf32>
    %32 = vector.shape_cast %31 : vector<16xf32> to vector<16x1xf32>
    %33 = vector.extract_strided_slice %11 {offsets = [0, 96], sizes = [16, 32], strides = [1, 1]} : vector<16x128xf32> to vector<16x32xf32>
    %34 = arith.mulf %20, %33 : vector<16x32xf32>
    %cst_23 = arith.constant dense<0.000000e+00> : vector<16xf32>
    %35 = vector.multi_reduction <add>, %34, %cst_23 [1] : vector<16x32xf32> to vector<16xf32>
    %36 = vector.shape_cast %35 : vector<16xf32> to vector<16x1xf32>
    %37 = arith.maximumf %24, %28 : vector<16x1xf32>
    %38 = arith.maximumf %37, %32 : vector<16x1xf32>
    %39 = arith.maximumf %38, %36 : vector<16x1xf32>
    %40 = arith.subf %24, %39 : vector<16x1xf32>
    %41 = math.exp %40 : vector<16x1xf32>
    %42 = arith.subf %28, %39 : vector<16x1xf32>
    %43 = math.exp %42 : vector<16x1xf32>
    %44 = arith.subf %32, %39 : vector<16x1xf32>
    %45 = math.exp %44 : vector<16x1xf32>
    %46 = arith.subf %36, %39 : vector<16x1xf32>
    %47 = math.exp %46 : vector<16x1xf32>
    %48 = arith.addf %41, %43 : vector<16x1xf32>
    %49 = arith.addf %48, %45 : vector<16x1xf32>
    %50 = arith.addf %49, %47 : vector<16x1xf32>
    %cst_24 = arith.constant 1.000000e+00 : f32
    %51 = vector.broadcast %cst_24 : f32 to vector<16x1xf32>
    %52 = arith.divf %51, %50 : vector<16x1xf32>
    %53 = arith.mulf %41, %52 : vector<16x1xf32>
    %54 = vector.extract_strided_slice %17 {offsets = [0, 0], sizes = [16, 32], strides = [1, 1]} : vector<16x128xf32> to vector<16x32xf32>
    %55 = vector.broadcast %53 : vector<16x1xf32> to vector<16x32xf32>
    %56 = arith.mulf %55, %54 : vector<16x32xf32>
    %57 = arith.mulf %43, %52 : vector<16x1xf32>
    %58 = vector.extract_strided_slice %17 {offsets = [0, 32], sizes = [16, 32], strides = [1, 1]} : vector<16x128xf32> to vector<16x32xf32>
    %59 = vector.broadcast %57 : vector<16x1xf32> to vector<16x32xf32>
    %60 = arith.mulf %59, %58 : vector<16x32xf32>
    %61 = arith.addf %56, %60 : vector<16x32xf32>
    %62 = arith.mulf %45, %52 : vector<16x1xf32>
    %63 = vector.extract_strided_slice %17 {offsets = [0, 64], sizes = [16, 32], strides = [1, 1]} : vector<16x128xf32> to vector<16x32xf32>
    %64 = vector.broadcast %62 : vector<16x1xf32> to vector<16x32xf32>
    %65 = arith.mulf %64, %63 : vector<16x32xf32>
    %66 = arith.addf %61, %65 : vector<16x32xf32>
    %67 = arith.mulf %47, %52 : vector<16x1xf32>
    %68 = vector.extract_strided_slice %17 {offsets = [0, 96], sizes = [16, 32], strides = [1, 1]} : vector<16x128xf32> to vector<16x32xf32>
    %69 = vector.broadcast %67 : vector<16x1xf32> to vector<16x32xf32>
    %70 = arith.mulf %69, %68 : vector<16x32xf32>
    %71 = arith.addf %66, %70 : vector<16x32xf32>
    %c0_25 = arith.constant 0 : index
    %c0_26 = arith.constant 0 : index
    %72 = vector.load %arg17[%c0_25, %c0_26] : memref<16x128xf32, #tpu.memory_space<vmem>>, vector<16x32xf32>
    tpu.vector_store %arg17[%c0_25, %c0_26], %71 {strides = array<i32>} : memref<16x128xf32, #tpu.memory_space<vmem>>, vector<16x32xf32>,
    %73 = vector.extract_strided_slice %19 {offsets = [0, 32], sizes = [16, 32], strides = [1, 1]} : vector<16x128xf32> to vector<16x32xf32>
    %74 = vector.extract_strided_slice %11 {offsets = [0, 0], sizes = [16, 32], strides = [1, 1]} : vector<16x128xf32> to vector<16x32xf32>
    %75 = arith.mulf %73, %74 : vector<16x32xf32>
    %cst_27 = arith.constant dense<0.000000e+00> : vector<16xf32>
    %76 = vector.multi_reduction <add>, %75, %cst_27 [1] : vector<16x32xf32> to vector<16xf32>
    %77 = vector.shape_cast %76 : vector<16xf32> to vector<16x1xf32>
    %78 = vector.extract_strided_slice %11 {offsets = [0, 32], sizes = [16, 32], strides = [1, 1]} : vector<16x128xf32> to vector<16x32xf32>
    %79 = arith.mulf %73, %78 : vector<16x32xf32>
    %cst_28 = arith.constant dense<0.000000e+00> : vector<16xf32>
    %80 = vector.multi_reduction <add>, %79, %cst_28 [1] : vector<16x32xf32> to vector<16xf32>
    %81 = vector.shape_cast %80 : vector<16xf32> to vector<16x1xf32>
    %82 = vector.extract_strided_slice %11 {offsets = [0, 64], sizes = [16, 32], strides = [1, 1]} : vector<16x128xf32> to vector<16x32xf32>
    %83 = arith.mulf %73, %82 : vector<16x32xf32>
    %cst_29 = arith.constant dense<0.000000e+00> : vector<16xf32>
    %84 = vector.multi_reduction <add>, %83, %cst_29 [1] : vector<16x32xf32> to vector<16xf32>
    %85 = vector.shape_cast %84 : vector<16xf32> to vector<16x1xf32>
    %86 = vector.extract_strided_slice %11 {offsets = [0, 96], sizes = [16, 32], strides = [1, 1]} : vector<16x128xf32> to vector<16x32xf32>
    %87 = arith.mulf %73, %86 : vector<16x32xf32>
    %cst_30 = arith.constant dense<0.000000e+00> : vector<16xf32>
    %88 = vector.multi_reduction <add>, %87, %cst_30 [1] : vector<16x32xf32> to vector<16xf32>
    %89 = vector.shape_cast %88 : vector<16xf32> to vector<16x1xf32>
    %90 = arith.maximumf %77, %81 : vector<16x1xf32>
    %91 = arith.maximumf %90, %85 : vector<16x1xf32>
    %92 = arith.maximumf %91, %89 : vector<16x1xf32>
    %93 = arith.subf %77, %92 : vector<16x1xf32>
    %94 = math.exp %93 : vector<16x1xf32>
    %95 = arith.subf %81, %92 : vector<16x1xf32>
    %96 = math.exp %95 : vector<16x1xf32>
    %97 = arith.subf %85, %92 : vector<16x1xf32>
    %98 = math.exp %97 : vector<16x1xf32>
    %99 = arith.subf %89, %92 : vector<16x1xf32>
    %100 = math.exp %99 : vector<16x1xf32>
    %101 = arith.addf %94, %96 : vector<16x1xf32>
    %102 = arith.addf %101, %98 : vector<16x1xf32>
    %103 = arith.addf %102, %100 : vector<16x1xf32>
    %cst_31 = arith.constant 1.000000e+00 : f32
    %104 = vector.broadcast %cst_31 : f32 to vector<16x1xf32>
    %105 = arith.divf %104, %103 : vector<16x1xf32>
    %106 = arith.mulf %94, %105 : vector<16x1xf32>
    %107 = vector.extract_strided_slice %17 {offsets = [0, 0], sizes = [16, 32], strides = [1, 1]} : vector<16x128xf32> to vector<16x32xf32>
    %108 = vector.broadcast %106 : vector<16x1xf32> to vector<16x32xf32>
    %109 = arith.mulf %108, %107 : vector<16x32xf32>
    %110 = arith.mulf %96, %105 : vector<16x1xf32>
    %111 = vector.extract_strided_slice %17 {offsets = [0, 32], sizes = [16, 32], strides = [1, 1]} : vector<16x128xf32> to vector<16x32xf32>
    %112 = vector.broadcast %110 : vector<16x1xf32> to vector<16x32xf32>
    %113 = arith.mulf %112, %111 : vector<16x32xf32>
    %114 = arith.addf %109, %113 : vector<16x32xf32>
    %115 = arith.mulf %98, %105 : vector<16x1xf32>
    %116 = vector.extract_strided_slice %17 {offsets = [0, 64], sizes = [16, 32], strides = [1, 1]} : vector<16x128xf32> to vector<16x32xf32>
    %117 = vector.broadcast %115 : vector<16x1xf32> to vector<16x32xf32>
    %118 = arith.mulf %117, %116 : vector<16x32xf32>
    %119 = arith.addf %114, %118 : vector<16x32xf32>
    %120 = arith.mulf %100, %105 : vector<16x1xf32>
    %121 = vector.extract_strided_slice %17 {offsets = [0, 96], sizes = [16, 32], strides = [1, 1]} : vector<16x128xf32> to vector<16x32xf32>
    %122 = vector.broadcast %120 : vector<16x1xf32> to vector<16x32xf32>
    %123 = arith.mulf %122, %121 : vector<16x32xf32>
    %124 = arith.addf %119, %123 : vector<16x32xf32>
    %c0_32 = arith.constant 0 : index
    %c32 = arith.constant 32 : index
    %125 = vector.load %arg17[%c0_32, %c32] : memref<16x128xf32, #tpu.memory_space<vmem>>, vector<16x32xf32>
    tpu.vector_store %arg17[%c0_32, %c32], %124 {strides = array<i32>} : memref<16x128xf32, #tpu.memory_space<vmem>>, vector<16x32xf32>,
    %126 = vector.extract_strided_slice %19 {offsets = [0, 64], sizes = [16, 32], strides = [1, 1]} : vector<16x128xf32> to vector<16x32xf32>
    %127 = vector.extract_strided_slice %11 {offsets = [0, 0], sizes = [16, 32], strides = [1, 1]} : vector<16x128xf32> to vector<16x32xf32>
    %128 = arith.mulf %126, %127 : vector<16x32xf32>
    %cst_33 = arith.constant dense<0.000000e+00> : vector<16xf32>
    %129 = vector.multi_reduction <add>, %128, %cst_33 [1] : vector<16x32xf32> to vector<16xf32>
    %130 = vector.shape_cast %129 : vector<16xf32> to vector<16x1xf32>
    %131 = vector.extract_strided_slice %11 {offsets = [0, 32], sizes = [16, 32], strides = [1, 1]} : vector<16x128xf32> to vector<16x32xf32>
    %132 = arith.mulf %126, %131 : vector<16x32xf32>
    %cst_34 = arith.constant dense<0.000000e+00> : vector<16xf32>
    %133 = vector.multi_reduction <add>, %132, %cst_34 [1] : vector<16x32xf32> to vector<16xf32>
    %134 = vector.shape_cast %133 : vector<16xf32> to vector<16x1xf32>
    %135 = vector.extract_strided_slice %11 {offsets = [0, 64], sizes = [16, 32], strides = [1, 1]} : vector<16x128xf32> to vector<16x32xf32>
    %136 = arith.mulf %126, %135 : vector<16x32xf32>
    %cst_35 = arith.constant dense<0.000000e+00> : vector<16xf32>
    %137 = vector.multi_reduction <add>, %136, %cst_35 [1] : vector<16x32xf32> to vector<16xf32>
    %138 = vector.shape_cast %137 : vector<16xf32> to vector<16x1xf32>
    %139 = vector.extract_strided_slice %11 {offsets = [0, 96], sizes = [16, 32], strides = [1, 1]} : vector<16x128xf32> to vector<16x32xf32>
    %140 = arith.mulf %126, %139 : vector<16x32xf32>
    %cst_36 = arith.constant dense<0.000000e+00> : vector<16xf32>
    %141 = vector.multi_reduction <add>, %140, %cst_36 [1] : vector<16x32xf32> to vector<16xf32>
    %142 = vector.shape_cast %141 : vector<16xf32> to vector<16x1xf32>
    %143 = arith.maximumf %130, %134 : vector<16x1xf32>
    %144 = arith.maximumf %143, %138 : vector<16x1xf32>
    %145 = arith.maximumf %144, %142 : vector<16x1xf32>
    %146 = arith.subf %130, %145 : vector<16x1xf32>
    %147 = math.exp %146 : vector<16x1xf32>
    %148 = arith.subf %134, %145 : vector<16x1xf32>
    %149 = math.exp %148 : vector<16x1xf32>
    %150 = arith.subf %138, %145 : vector<16x1xf32>
    %151 = math.exp %150 : vector<16x1xf32>
    %152 = arith.subf %142, %145 : vector<16x1xf32>
    %153 = math.exp %152 : vector<16x1xf32>
    %154 = arith.addf %147, %149 : vector<16x1xf32>
    %155 = arith.addf %154, %151 : vector<16x1xf32>
    %156 = arith.addf %155, %153 : vector<16x1xf32>
    %cst_37 = arith.constant 1.000000e+00 : f32
    %157 = vector.broadcast %cst_37 : f32 to vector<16x1xf32>
    %158 = arith.divf %157, %156 : vector<16x1xf32>
    %159 = arith.mulf %147, %158 : vector<16x1xf32>
    %160 = vector.extract_strided_slice %17 {offsets = [0, 0], sizes = [16, 32], strides = [1, 1]} : vector<16x128xf32> to vector<16x32xf32>
    %161 = vector.broadcast %159 : vector<16x1xf32> to vector<16x32xf32>
    %162 = arith.mulf %161, %160 : vector<16x32xf32>
    %163 = arith.mulf %149, %158 : vector<16x1xf32>
    %164 = vector.extract_strided_slice %17 {offsets = [0, 32], sizes = [16, 32], strides = [1, 1]} : vector<16x128xf32> to vector<16x32xf32>
    %165 = vector.broadcast %163 : vector<16x1xf32> to vector<16x32xf32>
    %166 = arith.mulf %165, %164 : vector<16x32xf32>
    %167 = arith.addf %162, %166 : vector<16x32xf32>
    %168 = arith.mulf %151, %158 : vector<16x1xf32>
    %169 = vector.extract_strided_slice %17 {offsets = [0, 64], sizes = [16, 32], strides = [1, 1]} : vector<16x128xf32> to vector<16x32xf32>
    %170 = vector.broadcast %168 : vector<16x1xf32> to vector<16x32xf32>
    %171 = arith.mulf %170, %169 : vector<16x32xf32>
    %172 = arith.addf %167, %171 : vector<16x32xf32>
    %173 = arith.mulf %153, %158 : vector<16x1xf32>
    %174 = vector.extract_strided_slice %17 {offsets = [0, 96], sizes = [16, 32], strides = [1, 1]} : vector<16x128xf32> to vector<16x32xf32>
    %175 = vector.broadcast %173 : vector<16x1xf32> to vector<16x32xf32>
    %176 = arith.mulf %175, %174 : vector<16x32xf32>
    %177 = arith.addf %172, %176 : vector<16x32xf32>
    %c0_38 = arith.constant 0 : index
    %c64 = arith.constant 64 : index
    %178 = vector.load %arg17[%c0_38, %c64] : memref<16x128xf32, #tpu.memory_space<vmem>>, vector<16x32xf32>
    tpu.vector_store %arg17[%c0_38, %c64], %177 {strides = array<i32>} : memref<16x128xf32, #tpu.memory_space<vmem>>, vector<16x32xf32>,
    %179 = vector.extract_strided_slice %19 {offsets = [0, 96], sizes = [16, 32], strides = [1, 1]} : vector<16x128xf32> to vector<16x32xf32>
    %180 = vector.extract_strided_slice %11 {offsets = [0, 0], sizes = [16, 32], strides = [1, 1]} : vector<16x128xf32> to vector<16x32xf32>
    %181 = arith.mulf %179, %180 : vector<16x32xf32>
    %cst_39 = arith.constant dense<0.000000e+00> : vector<16xf32>
    %182 = vector.multi_reduction <add>, %181, %cst_39 [1] : vector<16x32xf32> to vector<16xf32>
    %183 = vector.shape_cast %182 : vector<16xf32> to vector<16x1xf32>
    %184 = vector.extract_strided_slice %11 {offsets = [0, 32], sizes = [16, 32], strides = [1, 1]} : vector<16x128xf32> to vector<16x32xf32>
    %185 = arith.mulf %179, %184 : vector<16x32xf32>
    %cst_40 = arith.constant dense<0.000000e+00> : vector<16xf32>
    %186 = vector.multi_reduction <add>, %185, %cst_40 [1] : vector<16x32xf32> to vector<16xf32>
    %187 = vector.shape_cast %186 : vector<16xf32> to vector<16x1xf32>
    %188 = vector.extract_strided_slice %11 {offsets = [0, 64], sizes = [16, 32], strides = [1, 1]} : vector<16x128xf32> to vector<16x32xf32>
    %189 = arith.mulf %179, %188 : vector<16x32xf32>
    %cst_41 = arith.constant dense<0.000000e+00> : vector<16xf32>
    %190 = vector.multi_reduction <add>, %189, %cst_41 [1] : vector<16x32xf32> to vector<16xf32>
    %191 = vector.shape_cast %190 : vector<16xf32> to vector<16x1xf32>
    %192 = vector.extract_strided_slice %11 {offsets = [0, 96], sizes = [16, 32], strides = [1, 1]} : vector<16x128xf32> to vector<16x32xf32>
    %193 = arith.mulf %179, %192 : vector<16x32xf32>
    %cst_42 = arith.constant dense<0.000000e+00> : vector<16xf32>
    %194 = vector.multi_reduction <add>, %193, %cst_42 [1] : vector<16x32xf32> to vector<16xf32>
    %195 = vector.shape_cast %194 : vector<16xf32> to vector<16x1xf32>
    %196 = arith.maximumf %183, %187 : vector<16x1xf32>
    %197 = arith.maximumf %196, %191 : vector<16x1xf32>
    %198 = arith.maximumf %197, %195 : vector<16x1xf32>
    %199 = arith.subf %183, %198 : vector<16x1xf32>
    %200 = math.exp %199 : vector<16x1xf32>
    %201 = arith.subf %187, %198 : vector<16x1xf32>
    %202 = math.exp %201 : vector<16x1xf32>
    %203 = arith.subf %191, %198 : vector<16x1xf32>
    %204 = math.exp %203 : vector<16x1xf32>
    %205 = arith.subf %195, %198 : vector<16x1xf32>
    %206 = math.exp %205 : vector<16x1xf32>
    %207 = arith.addf %200, %202 : vector<16x1xf32>
    %208 = arith.addf %207, %204 : vector<16x1xf32>
    %209 = arith.addf %208, %206 : vector<16x1xf32>
    %cst_43 = arith.constant 1.000000e+00 : f32
    %210 = vector.broadcast %cst_43 : f32 to vector<16x1xf32>
    %211 = arith.divf %210, %209 : vector<16x1xf32>
    %212 = arith.mulf %200, %211 : vector<16x1xf32>
    %213 = vector.extract_strided_slice %17 {offsets = [0, 0], sizes = [16, 32], strides = [1, 1]} : vector<16x128xf32> to vector<16x32xf32>
    %214 = vector.broadcast %212 : vector<16x1xf32> to vector<16x32xf32>
    %215 = arith.mulf %214, %213 : vector<16x32xf32>
    %216 = arith.mulf %202, %211 : vector<16x1xf32>
    %217 = vector.extract_strided_slice %17 {offsets = [0, 32], sizes = [16, 32], strides = [1, 1]} : vector<16x128xf32> to vector<16x32xf32>
    %218 = vector.broadcast %216 : vector<16x1xf32> to vector<16x32xf32>
    %219 = arith.mulf %218, %217 : vector<16x32xf32>
    %220 = arith.addf %215, %219 : vector<16x32xf32>
    %221 = arith.mulf %204, %211 : vector<16x1xf32>
    %222 = vector.extract_strided_slice %17 {offsets = [0, 64], sizes = [16, 32], strides = [1, 1]} : vector<16x128xf32> to vector<16x32xf32>
    %223 = vector.broadcast %221 : vector<16x1xf32> to vector<16x32xf32>
    %224 = arith.mulf %223, %222 : vector<16x32xf32>
    %225 = arith.addf %220, %224 : vector<16x32xf32>
    %226 = arith.mulf %206, %211 : vector<16x1xf32>
    %227 = vector.extract_strided_slice %17 {offsets = [0, 96], sizes = [16, 32], strides = [1, 1]} : vector<16x128xf32> to vector<16x32xf32>
    %228 = vector.broadcast %226 : vector<16x1xf32> to vector<16x32xf32>
    %229 = arith.mulf %228, %227 : vector<16x32xf32>
    %230 = arith.addf %225, %229 : vector<16x32xf32>
    %c0_44 = arith.constant 0 : index
    %c96 = arith.constant 96 : index
    %231 = vector.load %arg17[%c0_44, %c96] : memref<16x128xf32, #tpu.memory_space<vmem>>, vector<16x32xf32>
    tpu.vector_store %arg17[%c0_44, %c96], %230 {strides = array<i32>} : memref<16x128xf32, #tpu.memory_space<vmem>>, vector<16x32xf32>,
    %c0_45 = arith.constant 0 : index
    %c0_46 = arith.constant 0 : index
    %232 = vector.load %arg17[%c0_45, %c0_46] : memref<16x128xf32, #tpu.memory_space<vmem>>, vector<16x128xf32>
    %c0_47 = arith.constant 0 : index
    %c0_48 = arith.constant 0 : index
    %233 = vector.load %arg10[%c0_47, %c0_48] : memref<128x512xf32, #tpu.memory_space<vmem>>, vector<128x512xf32>
    %cst_49 = arith.constant dense<0.000000e+00> : vector<16x512xf32>
    %234 = tpu.matmul %232, %233, %cst_49 {dimension_numbers = #tpu.dot_dimension_numbers<[1], [0], [0], [1], [0, 0, 1, 1], [], []>} : vector<16x128xf32>, vector<128x512xf32>, vector<16x512xf32> -> vector<16x512xf32>
    %c0_50 = arith.constant 0 : index
    %c0_51 = arith.constant 0 : index
    %235 = vector.load %arg11[%c0_50, %c0_51] : memref<1x512xf32, #tpu.memory_space<vmem>>, vector<1x512xf32>
    %236 = vector.broadcast %235 : vector<1x512xf32> to vector<16x512xf32>
    %237 = arith.addf %234, %236 : vector<16x512xf32>
    %cst_52 = arith.constant 5.000000e-01 : f32
    %238 = vector.broadcast %cst_52 : f32 to vector<16x512xf32>
    %239 = arith.mulf %238, %237 : vector<16x512xf32>
    %cst_53 = arith.constant 4.471500e-02 : f32
    %240 = vector.broadcast %cst_53 : f32 to vector<16x512xf32>
    %241 = arith.mulf %240, %237 : vector<16x512xf32>
    %242 = arith.mulf %241, %237 : vector<16x512xf32>
    %243 = arith.mulf %242, %237 : vector<16x512xf32>
    %244 = arith.addf %237, %243 : vector<16x512xf32>
    %cst_54 = arith.constant 0.797884583 : f32
    %245 = vector.broadcast %cst_54 : f32 to vector<16x512xf32>
    %246 = arith.mulf %245, %244 : vector<16x512xf32>
    %247 = math.tanh %246 : vector<16x512xf32>
    %cst_55 = arith.constant 1.000000e+00 : f32
    %248 = vector.broadcast %cst_55 : f32 to vector<16x512xf32>
    %249 = arith.addf %248, %247 : vector<16x512xf32>
    %250 = arith.mulf %239, %249 : vector<16x512xf32>
    %c0_56 = arith.constant 0 : index
    %c0_57 = arith.constant 0 : index
    %251 = vector.load %arg12[%c0_56, %c0_57] : memref<512x512xf32, #tpu.memory_space<vmem>>, vector<512x512xf32>
    %cst_58 = arith.constant dense<0.000000e+00> : vector<16x512xf32>
    %252 = tpu.matmul %250, %251, %cst_58 {dimension_numbers = #tpu.dot_dimension_numbers<[1], [0], [0], [1], [0, 0, 1, 1], [], []>} : vector<16x512xf32>, vector<512x512xf32>, vector<16x512xf32> -> vector<16x512xf32>
    %c0_59 = arith.constant 0 : index
    %c0_60 = arith.constant 0 : index
    %253 = vector.load %arg13[%c0_59, %c0_60] : memref<1x512xf32, #tpu.memory_space<vmem>>, vector<1x512xf32>
    %254 = vector.broadcast %253 : vector<1x512xf32> to vector<16x512xf32>
    %255 = arith.addf %252, %254 : vector<16x512xf32>
    %cst_61 = arith.constant 5.000000e-01 : f32
    %256 = vector.broadcast %cst_61 : f32 to vector<16x512xf32>
    %257 = arith.mulf %256, %255 : vector<16x512xf32>
    %cst_62 = arith.constant 4.471500e-02 : f32
    %258 = vector.broadcast %cst_62 : f32 to vector<16x512xf32>
    %259 = arith.mulf %258, %255 : vector<16x512xf32>
    %260 = arith.mulf %259, %255 : vector<16x512xf32>
    %261 = arith.mulf %260, %255 : vector<16x512xf32>
    %262 = arith.addf %255, %261 : vector<16x512xf32>
    %cst_63 = arith.constant 0.797884583 : f32
    %263 = vector.broadcast %cst_63 : f32 to vector<16x512xf32>
    %264 = arith.mulf %263, %262 : vector<16x512xf32>
    %265 = math.tanh %264 : vector<16x512xf32>
    %cst_64 = arith.constant 1.000000e+00 : f32
    %266 = vector.broadcast %cst_64 : f32 to vector<16x512xf32>
    %267 = arith.addf %266, %265 : vector<16x512xf32>
    %268 = arith.mulf %257, %267 : vector<16x512xf32>
    %c0_65 = arith.constant 0 : index
    %c0_66 = arith.constant 0 : index
    %269 = vector.load %arg14[%c0_65, %c0_66] : memref<512x128xf32, #tpu.memory_space<vmem>>, vector<512x128xf32>
    %cst_67 = arith.constant dense<0.000000e+00> : vector<16x128xf32>
    %270 = tpu.matmul %268, %269, %cst_67 {dimension_numbers = #tpu.dot_dimension_numbers<[1], [0], [0], [1], [0, 0, 1, 1], [], []>} : vector<16x512xf32>, vector<512x128xf32>, vector<16x128xf32> -> vector<16x128xf32>
    %c0_68 = arith.constant 0 : index
    %c0_69 = arith.constant 0 : index
    %271 = vector.load %arg15[%c0_68, %c0_69] : memref<1x128xf32, #tpu.memory_space<vmem>>, vector<1x128xf32>
    %272 = vector.broadcast %271 : vector<1x128xf32> to vector<16x128xf32>
    %273 = arith.addf %270, %272 : vector<16x128xf32>
    %c0_70 = arith.constant 0 : index
    %c0_71 = arith.constant 0 : index
    %274 = vector.load %arg16[%c0_70, %c0_71] : memref<16x128xf32, #tpu.memory_space<vmem>>, vector<16x128xf32>
    tpu.vector_store %arg16[%c0_70, %c0_71], %273 {strides = array<i32>} : memref<16x128xf32, #tpu.memory_space<vmem>>, vector<16x128xf32>,
    return
  }
  func.func @transform_0(%arg0: i32) -> (i32, i32) {
    %c0_i32 = arith.constant 0 : i32
    %c0_i32_0 = arith.constant 0 : i32
    return %arg0, %c0_i32 : i32, i32
  }
  func.func @transform_1(%arg0: i32) -> (i32, i32) {
    %c0_i32 = arith.constant 0 : i32
    %c0_i32_0 = arith.constant 0 : i32
    return %arg0, %c0_i32 : i32, i32
  }
  func.func @transform_2(%arg0: i32) -> (i32, i32) {
    %c0_i32 = arith.constant 0 : i32
    %c0_i32_0 = arith.constant 0 : i32
    return %arg0, %c0_i32 : i32, i32
  }
  func.func @transform_3(%arg0: i32) -> (i32, i32) {
    %c0_i32 = arith.constant 0 : i32
    %c0_i32_0 = arith.constant 0 : i32
    %c0_i32_1 = arith.constant 0 : i32
    return %c0_i32, %c0_i32_0 : i32, i32
  }
  func.func @transform_4(%arg0: i32) -> (i32, i32) {
    %c0_i32 = arith.constant 0 : i32
    %c0_i32_0 = arith.constant 0 : i32
    %c0_i32_1 = arith.constant 0 : i32
    return %c0_i32, %c0_i32_0 : i32, i32
  }
  func.func @transform_5(%arg0: i32) -> (i32, i32) {
    %c0_i32 = arith.constant 0 : i32
    %c0_i32_0 = arith.constant 0 : i32
    %c0_i32_1 = arith.constant 0 : i32
    return %c0_i32, %c0_i32_0 : i32, i32
  }
  func.func @transform_6(%arg0: i32) -> (i32, i32) {
    %c0_i32 = arith.constant 0 : i32
    %c0_i32_0 = arith.constant 0 : i32
    %c0_i32_1 = arith.constant 0 : i32
    return %c0_i32, %c0_i32_0 : i32, i32
  }
  func.func @transform_7(%arg0: i32) -> (i32, i32) {
    %c0_i32 = arith.constant 0 : i32
    %c0_i32_0 = arith.constant 0 : i32
    %c0_i32_1 = arith.constant 0 : i32
    return %c0_i32, %c0_i32_0 : i32, i32
  }
  func.func @transform_8(%arg0: i32) -> (i32, i32) {
    %c0_i32 = arith.constant 0 : i32
    %c0_i32_0 = arith.constant 0 : i32
    %c0_i32_1 = arith.constant 0 : i32
    return %c0_i32, %c0_i32_0 : i32, i32
  }
  func.func @transform_9(%arg0: i32) -> (i32, i32) {
    %c0_i32 = arith.constant 0 : i32
    %c0_i32_0 = arith.constant 0 : i32
    %c0_i32_1 = arith.constant 0 : i32
    return %c0_i32, %c0_i32_0 : i32, i32
  }
  func.func @transform_10(%arg0: i32) -> (i32, i32) {
    %c0_i32 = arith.constant 0 : i32
    %c0_i32_0 = arith.constant 0 : i32
    %c0_i32_1 = arith.constant 0 : i32
    return %c0_i32, %c0_i32_0 : i32, i32
  }
  func.func @transform_11(%arg0: i32) -> (i32, i32) {
    %c0_i32 = arith.constant 0 : i32
    %c0_i32_0 = arith.constant 0 : i32
    %c0_i32_1 = arith.constant 0 : i32
    return %c0_i32, %c0_i32_0 : i32, i32
  }
  func.func @transform_12(%arg0: i32) -> (i32, i32) {
    %c0_i32 = arith.constant 0 : i32
    %c0_i32_0 = arith.constant 0 : i32
    %c0_i32_1 = arith.constant 0 : i32
    return %c0_i32, %c0_i32_0 : i32, i32
  }
  func.func @transform_13(%arg0: i32) -> (i32, i32) {
    %c0_i32 = arith.constant 0 : i32
    %c0_i32_0 = arith.constant 0 : i32
    %c0_i32_1 = arith.constant 0 : i32
    return %c0_i32, %c0_i32_0 : i32, i32
  }
  func.func @transform_14(%arg0: i32) -> (i32, i32) {
    %c0_i32 = arith.constant 0 : i32
    %c0_i32_0 = arith.constant 0 : i32
    %c0_i32_1 = arith.constant 0 : i32
    return %c0_i32, %c0_i32_0 : i32, i32
  }
  func.func @transform_15(%arg0: i32) -> (i32, i32) {
    %c0_i32 = arith.constant 0 : i32
    %c0_i32_0 = arith.constant 0 : i32
    return %arg0, %c0_i32 : i32, i32
  }
}

</mosaic_0001>

<llo_original>
// kernel: high_order_attention.1
$region0: #{high_order_attention.1}
  #allocation0 [shape = 'u32[]', space=smem, size = 0x4, offset = 0x4, fixed_abs, tag = 'smem constant byte address 0x4 - core index']
  #allocation1 [shape = 'u32[144,128]{1,0:T(1,128)}', space=vmem, size = 0x12000, scoped, tag = 'internal scratch']
  #allocation2 [shape = 'f32[16,128]{1,0:T(8,128)}', space=vmem, size = 0x2000, scoped, tag = 'scratch operand']
  %s0 = inlined_call_operand.vmem [shape: f32[16,32], index: 0, kind: input, shape index: {}]
  %s1 = inlined_call_operand.vmem [shape: f32[16,32], index: 1, kind: input, shape index: {}]
  %s2 = inlined_call_operand.vmem [shape: f32[16,32], index: 2, kind: input, shape index: {}]
  %s3 = inlined_call_operand.vmem [shape: f32[32,128], index: 3, kind: input, shape index: {}]
  %s4 = inlined_call_operand.vmem [shape: f32[1,128], index: 4, kind: input, shape index: {}]
  %s5 = inlined_call_operand.vmem [shape: f32[32,128], index: 5, kind: input, shape index: {}]
  %s6 = inlined_call_operand.vmem [shape: f32[1,128], index: 6, kind: input, shape index: {}]
  %s7 = inlined_call_operand.vmem [shape: f32[32,128], index: 7, kind: input, shape index: {}]
  %s8 = inlined_call_operand.vmem [shape: f32[1,128], index: 8, kind: input, shape index: {}]
  %s9 = inlined_call_operand.vmem [shape: f32[128,512], index: 9, kind: input, shape index: {}]
  %s10 = inlined_call_operand.vmem [shape: f32[1,512], index: 10, kind: input, shape index: {}]
  %s11 = inlined_call_operand.hbm [shape: f32[512,512], index: 11, kind: input, shape index: {}]
  %s12 = inlined_call_operand.vmem [shape: f32[1,512], index: 12, kind: input, shape index: {}]
  %s13 = inlined_call_operand.vmem [shape: f32[512,128], index: 13, kind: input, shape index: {}]
  %s14 = inlined_call_operand.vmem [shape: f32[1,128], index: 14, kind: input, shape index: {}]
  %s15 = inlined_call_operand.vmem [shape: f32[16,128], index: 15, kind: output, shape index: {}]
  %s16 = sld [smem:[#allocation0]]
  $region74: #{high_order_attention.1} parent=0
    _
  %s18 = ssub.s32 1, %s16
  %s19 = scalar_select 0, %s18, %s16
  $region1: #{high_order_attention.1} parent=0
    #allocation3 [shape = 'u8[1048576]{0}', space=vmem, size = 0x100000, scoped, tag = 'input window, operand 11, single buffered']
    #allocation4 [shape = 's32[1]{0}', space=sflag, size = 0x4, scoped, tag = 'scoped memory for high_order_attention.1']
    %20 = vsyncpa [#allocation4], 0
    // Predicated region
    $region2: #{high_order_attention.1} parent=1 // pred_check
      _
    $region3: #{high_order_attention.1} parent=1 // pred_check_branch
      %22 = sbr.rel (0) target = $region5
    $region4: #{high_order_attention.1} parent=1 // pred_region
      _
    $region5: #{high_order_attention.1} parent=1 // pred_fallthru
      _
    // Predicated region
    $region6: #{high_order_attention.1} parent=1 // pred_check
      _
    $region7: #{high_order_attention.1} parent=1 // pred_check_branch
      %24 = sbr.rel (0) target = $region9
    $region8: #{high_order_attention.1} parent=1 // pred_region
      _
    $region9: #{high_order_attention.1} parent=1 // pred_fallthru
      _
    // Predicated region
    $region10: #{high_order_attention.1} parent=1 // pred_check
      _
    $region11: #{high_order_attention.1} parent=1 // pred_check_branch
      %26 = sbr.rel (0) target = $region13
    $region12: #{high_order_attention.1} parent=1 // pred_region
      _
    $region13: #{high_order_attention.1} parent=1 // pred_fallthru
      _
    // Predicated region
    $region14: #{high_order_attention.1} parent=1 // pred_check
      _
    $region15: #{high_order_attention.1} parent=1 // pred_check_branch
      %28 = sbr.rel (0) target = $region17
    $region16: #{high_order_attention.1} parent=1 // pred_region
      _
    $region17: #{high_order_attention.1} parent=1 // pred_fallthru
      _
    // Predicated region
    $region18: #{high_order_attention.1} parent=1 // pred_check
      _
    $region19: #{high_order_attention.1} parent=1 // pred_check_branch
      %30 = sbr.rel (0) target = $region21
    $region20: #{high_order_attention.1} parent=1 // pred_region
      _
    $region21: #{high_order_attention.1} parent=1 // pred_fallthru
      _
    // Predicated region
    $region22: #{high_order_attention.1} parent=1 // pred_check
      _
    $region23: #{high_order_attention.1} parent=1 // pred_check_branch
      %32 = sbr.rel (0) target = $region25
    $region24: #{high_order_attention.1} parent=1 // pred_region
      _
    $region25: #{high_order_attention.1} parent=1 // pred_fallthru
      _
    // Predicated region
    $region26: #{high_order_attention.1} parent=1 // pred_check
      _
    $region27: #{high_order_attention.1} parent=1 // pred_check_branch
      %34 = sbr.rel (0) target = $region29
    $region28: #{high_order_attention.1} parent=1 // pred_region
      _
    $region29: #{high_order_attention.1} parent=1 // pred_fallthru
      _
    // Predicated region
    $region30: #{high_order_attention.1} parent=1 // pred_check
      _
    $region31: #{high_order_attention.1} parent=1 // pred_check_branch
      %36 = sbr.rel (0) target = $region33
    $region32: #{high_order_attention.1} parent=1 // pred_region
      _
    $region33: #{high_order_attention.1} parent=1 // pred_fallthru
      _
    // Predicated region
    $region34: #{high_order_attention.1} parent=1 // pred_check
      _
    $region35: #{high_order_attention.1} parent=1 // pred_check_branch
      %38 = sbr.rel (0) target = $region37
    $region36: #{high_order_attention.1} parent=1 // pred_region
      _
    $region37: #{high_order_attention.1} parent=1 // pred_fallthru
      _
    // Predicated region
    $region38: #{high_order_attention.1} parent=1 // pred_check
      _
    $region39: #{high_order_attention.1} parent=1 // pred_check_branch
      %40 = sbr.rel (0) target = $region41
    $region40: #{high_order_attention.1} parent=1 // pred_region
      _
    $region41: #{high_order_attention.1} parent=1 // pred_fallthru
      _
    // Predicated region
    $region42: #{high_order_attention.1} parent=1 // pred_check
      _
    $region43: #{high_order_attention.1} parent=1 // pred_check_branch
      %42 = sbr.rel (0) target = $region45
    $region44: #{high_order_attention.1} parent=1 // pred_region
      _
    $region45: #{high_order_attention.1} parent=1 // pred_fallthru
      _
    // Predicated region
    $region46: #{high_order_attention.1} parent=1 // pred_check
      _
    $region47: #{high_order_attention.1} parent=1 // pred_check_branch
      %44 = sbr.rel (0) target = $region49
    $region48: #{high_order_attention.1} parent=1 // pred_region
      %s46 = ssub.s32 32768, 32768
      %47 = vsyncadd [#allocation4], %s46
      %s48 = sshll.u32 [#allocation3], 4
      %s49 = int_to_ptr.vmem [resolvable:$true] %s48
      %54 = dma.hbm_to_vmem [thread:$0]  %s11, 32768, %s49, [#allocation4], 512, 512, 32
    $region49: #{high_order_attention.1} parent=1 // pred_fallthru
      _
    // Predicated region
    $region50: #{high_order_attention.1} parent=1 // pred_check
      _
    $region51: #{high_order_attention.1} parent=1 // pred_check_branch
      %56 = sbr.rel (0) target = $region53
    $region52: #{high_order_attention.1} parent=1 // pred_region
      _
    $region53: #{high_order_attention.1} parent=1 // pred_fallthru
      _
    // Predicated region
    $region54: #{high_order_attention.1} parent=1 // pred_check
      _
    $region55: #{high_order_attention.1} parent=1 // pred_check_branch
      %58 = sbr.rel (0) target = $region57
    $region56: #{high_order_attention.1} parent=1 // pred_region
      _
    $region57: #{high_order_attention.1} parent=1 // pred_fallthru
      _
    // Predicated region
    $region58: #{high_order_attention.1} parent=1 // pred_check
      _
    $region59: #{high_order_attention.1} parent=1 // pred_check_branch
      %60 = sbr.rel (0) target = $region61
    $region60: #{high_order_attention.1} parent=1 // pred_region
      _
    $region61: #{high_order_attention.1} parent=1 // pred_fallthru
      _
    // Predicated region
    $region62: #{high_order_attention.1} parent=1 // pred_check
      _
    $region63: #{high_order_attention.1} parent=1 // pred_check_branch
      %62 = sbr.rel (0) target = $region65
    $region64: #{high_order_attention.1} parent=1 // pred_region
      %63 = dma.done [#allocation4], 32768
    $region65: #{high_order_attention.1} parent=1 // pred_fallthru
      _
    %v64 = vld [vmem:[%s0] sm:$0xff]
    %v65 = vld [vmem:[%s0 + $0x8] sm:$0xff]
    %v66 = vld [vmem:[%s3] sm:$0xff]
    %v67 = vld [vmem:[%s3 + $0x8] sm:$0xff]
    %v68 = vld [vmem:[%s3 + $0x10] sm:$0xff]
    %v69 = vld [vmem:[%s3 + $0x18] sm:$0xff]
    %v70 = vld [vmem:[%s4] sm:$0x1]
    %v72 = vlaneseq
    %v73 = vshrl.u32 %v72, 7
    %v74 = vsub.s32 0, %v73
    %v75 = vrot.slane %v70, %v74
    %vm77 = vcmask 261120
    %v79 = vsel %vm77, %v64, 0
    %v82 = vsel %vm77, %v65, 0
    %84 = vmatprep.subr.mxu0 0.0
    %85 = vmatpush1.msra.mxu0 %v66
    %86 = vmatprep.subr.mxu0 0.0
    %87 = vmatpush1.msra.mxu0 %v67
    %88 = vmatprep.subr.mxu0 0.0
    %89 = vmatpush1.msra.mxu0 %v68
    %90 = vmatprep.subr.mxu0 0.0
    %91 = vmatpush1.msra.mxu0 %v69
    %92 = vmatprep.subr.mxu0 0.0
    %93 = vmatpush1.msra.mxu0 0.0
    %94 = vmatprep.subr.mxu0 0.0
    %95 = vmatpush1.msra.mxu0 0.0
    %96 = vmatprep.subr.mxu0 0.0
    %97 = vmatpush1.msra.mxu0 0.0
    %98 = vmatprep.subr.mxu0 0.0
    %99 = vmatpush1.msra.mxu0 0.0
    %100 = vmatprep.subr.mxu0 0.0
    %101 = vmatpush1.msra.mxu0 0.0
    %102 = vmatprep.subr.mxu0 0.0
    %103 = vmatpush1.msra.mxu0 0.0
    %104 = vmatprep.subr.mxu0 0.0
    %105 = vmatpush1.msra.mxu0 0.0
    %106 = vmatprep.subr.mxu0 0.0
    %107 = vmatpush1.msra.mxu0 0.0
    %108 = vmatprep.subr.mxu0 0.0
    %109 = vmatpush1.msra.mxu0 0.0
    %110 = vmatprep.subr.mxu0 0.0
    %111 = vmatpush1.msra.mxu0 0.0
    %112 = vmatprep.subr.mxu0 0.0
    %113 = vmatpush1.msra.mxu0 0.0
    %114 = vmatprep.subr.mxu0 0.0
    %115 = vmatpush1.msra.mxu0 0.0
    %116 = vmatprep.subr.mxu0 0.0
    %117 = vmatpush1.msra.mxu0 0.0
    %118 = vmatprep.subr.mxu0 0.0
    %119 = vmatpush1.msra.mxu0 0.0
    %120 = vmatprep.subr.mxu0 0.0
    %121 = vmatpush1.msra.mxu0 0.0
    %122 = vmatprep.subr.mxu0 0.0
    %123 = vmatpush1.msra.mxu0 0.0
    %124 = vmatprep.subr.mxu0 0.0
    %125 = vmatpush1.msra.mxu0 0.0
    %126 = vmatprep.subr.mxu0 0.0
    %127 = vmatpush1.msra.mxu0 0.0
    %128 = vmatprep.subr.mxu0 0.0
    %129 = vmatpush1.msra.mxu0 0.0
    %130 = vmatprep.subr.mxu0 0.0
    %131 = vmatpush1.msra.mxu0 0.0
    %132 = vmatprep.subr.mxu0 0.0
    %133 = vmatpush1.msra.mxu0 0.0
    %134 = vmatprep.subr.mxu0 0.0
    %135 = vmatpush1.msra.mxu0 0.0
    %136 = vmatprep.subr.mxu0 0.0
    %137 = vmatpush1.msra.mxu0 0.0
    %138 = vmatprep.subr.mxu0 0.0
    %139 = vmatpush1.msra.mxu0 0.0
    %140 = vmatprep.subr.mxu0 0.0
    %141 = vmatpush1.msra.mxu0 0.0
    %142 = vmatprep.subr.mxu0 0.0
    %143 = vmatpush1.msra.mxu0 0.0
    %144 = vmatprep.subr.mxu0 0.0
    %145 = vmatpush1.msra.mxu0 0.0
    %146 = vmatprep.subr.mxu0 0.0
    %147 = vmatpush1.msra.mxu0 0.0
    %148 = vmatprep.mubr.f32.mxu0 0.0
    %149 = vmatmul.mubr.f32.gmra.mrb[0].mxu0 %v79
    %v150 = vpop.f32.mrb[0].mxu0
    %v151 = vadd.f32 %v75, %v150
    %v152 = vpop.f32.mrb[0].mxu0
    %153 = vmatprep.mubr.f32.mxu0 0.0
    %154 = vmatmul.mubr.f32.gmra.mrb[0].mxu0 %v82
    %v155 = vpop.f32.mrb[0].mxu0
    %v156 = vadd.f32 %v75, %v155
    %v157 = vpop.f32.mrb[0].mxu0
    %158 = vdwg.mxu0
    %v159 = vld [vmem:[%s1] sm:$0xff]
    %v160 = vld [vmem:[%s1 + $0x8] sm:$0xff]
    %v161 = vld [vmem:[%s5] sm:$0xff]
    %v162 = vld [vmem:[%s5 + $0x8] sm:$0xff]
    %v163 = vld [vmem:[%s5 + $0x10] sm:$0xff]
    %v164 = vld [vmem:[%s5 + $0x18] sm:$0xff]
    %v165 = vld [vmem:[%s6] sm:$0x1]
    %v167 = vlaneseq
    %v168 = vshrl.u32 %v167, 7
    %v169 = vsub.s32 0, %v168
    %v170 = vrot.slane %v165, %v169
    %v173 = vsel %vm77, %v159, 0
    %v176 = vsel %vm77, %v160, 0
    %178 = vmatprep.subr.mxu0 0.0
    %179 = vmatpush1.msra.mxu0 %v161
    %180 = vmatprep.subr.mxu0 0.0
    %181 = vmatpush1.msra.mxu0 %v162
    %182 = vmatprep.subr.mxu0 0.0
    %183 = vmatpush1.msra.mxu0 %v163
    %184 = vmatprep.subr.mxu0 0.0
    %185 = vmatpush1.msra.mxu0 %v164
    %186 = vmatprep.subr.mxu0 0.0
    %187 = vmatpush1.msra.mxu0 0.0
    %188 = vmatprep.subr.mxu0 0.0
    %189 = vmatpush1.msra.mxu0 0.0
    %190 = vmatprep.subr.mxu0 0.0
    %191 = vmatpush1.msra.mxu0 0.0
    %192 = vmatprep.subr.mxu0 0.0
    %193 = vmatpush1.msra.mxu0 0.0
    %194 = vmatprep.subr.mxu0 0.0
    %195 = vmatpush1.msra.mxu0 0.0
    %196 = vmatprep.subr.mxu0 0.0
    %197 = vmatpush1.msra.mxu0 0.0
    %198 = vmatprep.subr.mxu0 0.0
    %199 = vmatpush1.msra.mxu0 0.0
    %200 = vmatprep.subr.mxu0 0.0
    %201 = vmatpush1.msra.mxu0 0.0
    %202 = vmatprep.subr.mxu0 0.0
    %203 = vmatpush1.msra.mxu0 0.0
    %204 = vmatprep.subr.mxu0 0.0
    %205 = vmatpush1.msra.mxu0 0.0
    %206 = vmatprep.subr.mxu0 0.0
    %207 = vmatpush1.msra.mxu0 0.0
    %208 = vmatprep.subr.mxu0 0.0
    %209 = vmatpush1.msra.mxu0 0.0
    %210 = vmatprep.subr.mxu0 0.0
    %211 = vmatpush1.msra.mxu0 0.0
    %212 = vmatprep.subr.mxu0 0.0
    %213 = vmatpush1.msra.mxu0 0.0
    %214 = vmatprep.subr.mxu0 0.0
    %215 = vmatpush1.msra.mxu0 0.0
    %216 = vmatprep.subr.mxu0 0.0
    %217 = vmatpush1.msra.mxu0 0.0
    %218 = vmatprep.subr.mxu0 0.0
    %219 = vmatpush1.msra.mxu0 0.0
    %220 = vmatprep.subr.mxu0 0.0
    %221 = vmatpush1.msra.mxu0 0.0
    %222 = vmatprep.subr.mxu0 0.0
    %223 = vmatpush1.msra.mxu0 0.0
    %224 = vmatprep.subr.mxu0 0.0
    %225 = vmatpush1.msra.mxu0 0.0
    %226 = vmatprep.subr.mxu0 0.0
    %227 = vmatpush1.msra.mxu0 0.0
    %228 = vmatprep.subr.mxu0 0.0
    %229 = vmatpush1.msra.mxu0 0.0
    %230 = vmatprep.subr.mxu0 0.0
    %231 = vmatpush1.msra.mxu0 0.0
    %232 = vmatprep.subr.mxu0 0.0
    %233 = vmatpush1.msra.mxu0 0.0
    %234 = vmatprep.subr.mxu0 0.0
    %235 = vmatpush1.msra.mxu0 0.0
    %236 = vmatprep.subr.mxu0 0.0
    %237 = vmatpush1.msra.mxu0 0.0
    %238 = vmatprep.subr.mxu0 0.0
    %239 = vmatpush1.msra.mxu0 0.0
    %240 = vmatprep.subr.mxu0 0.0
    %241 = vmatpush1.msra.mxu0 0.0
    %242 = vmatprep.mubr.f32.mxu0 0.0
    %243 = vmatmul.mubr.f32.gmra.mrb[0].mxu0 %v173
    %v244 = vpop.f32.mrb[0].mxu0
    %v245 = vadd.f32 %v170, %v244
    %v246 = vpop.f32.mrb[0].mxu0
    %247 = vmatprep.mubr.f32.mxu0 0.0
    %248 = vmatmul.mubr.f32.gmra.mrb[0].mxu0 %v176
    %v249 = vpop.f32.mrb[0].mxu0
    %v250 = vadd.f32 %v170, %v249
    %v251 = vpop.f32.mrb[0].mxu0
    %252 = vdwg.mxu0
    %v253 = vld [vmem:[%s2] sm:$0xff]
    %v254 = vld [vmem:[%s2 + $0x8] sm:$0xff]
    %v255 = vld [vmem:[%s7] sm:$0xff]
    %v256 = vld [vmem:[%s7 + $0x8] sm:$0xff]
    %v257 = vld [vmem:[%s7 + $0x10] sm:$0xff]
    %v258 = vld [vmem:[%s7 + $0x18] sm:$0xff]
    %v259 = vld [vmem:[%s8] sm:$0x1]
    %v261 = vlaneseq
    %v262 = vshrl.u32 %v261, 7
    %v263 = vsub.s32 0, %v262
    %v264 = vrot.slane %v259, %v263
    %v267 = vsel %vm77, %v253, 0
    %v270 = vsel %vm77, %v254, 0
    %272 = vmatprep.subr.mxu0 0.0
    %273 = vmatpush1.msra.mxu0 %v255
    %274 = vmatprep.subr.mxu0 0.0
    %275 = vmatpush1.msra.mxu0 %v256
    %276 = vmatprep.subr.mxu0 0.0
    %277 = vmatpush1.msra.mxu0 %v257
    %278 = vmatprep.subr.mxu0 0.0
    %279 = vmatpush1.msra.mxu0 %v258
    %280 = vmatprep.subr.mxu0 0.0
    %281 = vmatpush1.msra.mxu0 0.0
    %282 = vmatprep.subr.mxu0 0.0
    %283 = vmatpush1.msra.mxu0 0.0
    %284 = vmatprep.subr.mxu0 0.0
    %285 = vmatpush1.msra.mxu0 0.0
    %286 = vmatprep.subr.mxu0 0.0
    %287 = vmatpush1.msra.mxu0 0.0
    %288 = vmatprep.subr.mxu0 0.0
    %289 = vmatpush1.msra.mxu0 0.0
    %290 = vmatprep.subr.mxu0 0.0
    %291 = vmatpush1.msra.mxu0 0.0
    %292 = vmatprep.subr.mxu0 0.0
    %293 = vmatpush1.msra.mxu0 0.0
    %294 = vmatprep.subr.mxu0 0.0
    %295 = vmatpush1.msra.mxu0 0.0
    %296 = vmatprep.subr.mxu0 0.0
    %297 = vmatpush1.msra.mxu0 0.0
    %298 = vmatprep.subr.mxu0 0.0
    %299 = vmatpush1.msra.mxu0 0.0
    %300 = vmatprep.subr.mxu0 0.0
    %301 = vmatpush1.msra.mxu0 0.0
    %302 = vmatprep.subr.mxu0 0.0
    %303 = vmatpush1.msra.mxu0 0.0
    %304 = vmatprep.subr.mxu0 0.0
    %305 = vmatpush1.msra.mxu0 0.0
    %306 = vmatprep.subr.mxu0 0.0
    %307 = vmatpush1.msra.mxu0 0.0
    %308 = vmatprep.subr.mxu0 0.0
    %309 = vmatpush1.msra.mxu0 0.0
    %310 = vmatprep.subr.mxu0 0.0
    %311 = vmatpush1.msra.mxu0 0.0
    %312 = vmatprep.subr.mxu0 0.0
    %313 = vmatpush1.msra.mxu0 0.0
    %314 = vmatprep.subr.mxu0 0.0
    %315 = vmatpush1.msra.mxu0 0.0
    %316 = vmatprep.subr.mxu0 0.0
    %317 = vmatpush1.msra.mxu0 0.0
    %318 = vmatprep.subr.mxu0 0.0
    %319 = vmatpush1.msra.mxu0 0.0
    %320 = vmatprep.subr.mxu0 0.0
    %321 = vmatpush1.msra.mxu0 0.0
    %322 = vmatprep.subr.mxu0 0.0
    %323 = vmatpush1.msra.mxu0 0.0
    %324 = vmatprep.subr.mxu0 0.0
    %325 = vmatpush1.msra.mxu0 0.0
    %326 = vmatprep.subr.mxu0 0.0
    %327 = vmatpush1.msra.mxu0 0.0
    %328 = vmatprep.subr.mxu0 0.0
    %329 = vmatpush1.msra.mxu0 0.0
    %330 = vmatprep.subr.mxu0 0.0
    %331 = vmatpush1.msra.mxu0 0.0
    %332 = vmatprep.subr.mxu0 0.0
    %333 = vmatpush1.msra.mxu0 0.0
    %334 = vmatprep.subr.mxu0 0.0
    %335 = vmatpush1.msra.mxu0 0.0
    %336 = vmatprep.mubr.f32.mxu0 0.0
    %337 = vmatmul.mubr.f32.gmra.mrb[0].mxu0 %v267
    %v338 = vpop.f32.mrb[0].mxu0
    %v339 = vadd.f32 %v264, %v338
    %v340 = vpop.f32.mrb[0].mxu0
    %341 = vmatprep.mubr.f32.mxu0 0.0
    %342 = vmatmul.mubr.f32.gmra.mrb[0].mxu0 %v270
    %v343 = vpop.f32.mrb[0].mxu0
    %v344 = vadd.f32 %v264, %v343
    %v345 = vpop.f32.mrb[0].mxu0
    %346 = vdwg.mxu0
    %v347 = vmul.f32 %v151, 0.17677669
    %v348 = vmul.f32 %v156, 0.17677669
    %v349 = vmul.f32 %v347, %v245
    %v350 = vmul.f32 %v348, %v250
    %v351 = vsel %vm77, %v349, 0.0
    %352 = vadd.xlane.f32.xlu0 %v351
    %v353 = vpop.xlane.xlu0 %352
    %v354 = vsel %vm77, %v350, 0.0
    %355 = vadd.xlane.f32.xlu0 %v354
    %v356 = vpop.xlane.xlu0 %355
    %359 = vrot.lane.b32.xlu0 %v245, 96
    %v360 = vpop.permute.xlu0 %359
    %361 = vrot.lane.b32.xlu0 %v250, 96
    %v362 = vpop.permute.xlu0 %361
    %v365 = vmul.f32 %v347, %v360
    %v366 = vmul.f32 %v348, %v362
    %v367 = vsel %vm77, %v365, 0.0
    %368 = vadd.xlane.f32.xlu0 %v367
    %v369 = vpop.xlane.xlu0 %368
    %v370 = vsel %vm77, %v366, 0.0
    %371 = vadd.xlane.f32.xlu0 %v370
    %v372 = vpop.xlane.xlu0 %371
    %373 = vrot.lane.b32.xlu0 %v245, 64
    %v374 = vpop.permute.xlu0 %373
    %375 = vrot.lane.b32.xlu0 %v250, 64
    %v376 = vpop.permute.xlu0 %375
    %v379 = vmul.f32 %v347, %v374
    %v380 = vmul.f32 %v348, %v376
    %v381 = vsel %vm77, %v379, 0.0
    %382 = vadd.xlane.f32.xlu0 %v381
    %v383 = vpop.xlane.xlu0 %382
    %v384 = vsel %vm77, %v380, 0.0
    %385 = vadd.xlane.f32.xlu0 %v384
    %v386 = vpop.xlane.xlu0 %385
    %387 = vrot.lane.b32.xlu0 %v245, 32
    %v388 = vpop.permute.xlu0 %387
    %389 = vrot.lane.b32.xlu0 %v250, 32
    %v390 = vpop.permute.xlu0 %389
    %v393 = vmul.f32 %v347, %v388
    %v394 = vmul.f32 %v348, %v390
    %v395 = vsel %vm77, %v393, 0.0
    %396 = vadd.xlane.f32.xlu0 %v395
    %v397 = vpop.xlane.xlu0 %396
    %v398 = vsel %vm77, %v394, 0.0
    %399 = vadd.xlane.f32.xlu0 %v398
    %v400 = vpop.xlane.xlu0 %399
    %v401 = vmax.f32 %v353, %v369
    %v402 = vmax.f32 %v356, %v372
    %v403 = vmax.f32 %v401, %v383
    %v404 = vmax.f32 %v402, %v386
    %v405 = vmax.f32 %v403, %v397
    %v406 = vmax.f32 %v404, %v400
    %v407 = vsub.f32 %v353, %v405
    %v408 = vsub.f32 %v356, %v406
    %v409 = vmul.f32 %v407, 1.442695
    %v410 = vpow.pop %v409
    %v411 = vmul.f32 %v408, 1.442695
    %v412 = vpow.pop %v411
    %v413 = vsub.f32 %v369, %v405
    %v414 = vsub.f32 %v372, %v406
    %v415 = vmul.f32 %v413, 1.442695
    %v416 = vpow.pop %v415
    %v417 = vmul.f32 %v414, 1.442695
    %v418 = vpow.pop %v417
    %v419 = vsub.f32 %v383, %v405
    %v420 = vsub.f32 %v386, %v406
    %v421 = vmul.f32 %v419, 1.442695
    %v422 = vpow.pop %v421
    %v423 = vmul.f32 %v420, 1.442695
    %v424 = vpow.pop %v423
    %v425 = vsub.f32 %v397, %v405
    %v426 = vsub.f32 %v400, %v406
    %v427 = vmul.f32 %v425, 1.442695
    %v428 = vpow.pop %v427
    %v429 = vmul.f32 %v426, 1.442695
    %v430 = vpow.pop %v429
    %v431 = vadd.f32 %v410, %v416
    %v432 = vadd.f32 %v412, %v418
    %v433 = vadd.f32 %v431, %v422
    %v434 = vadd.f32 %v432, %v424
    %v435 = vadd.f32 %v433, %v428
    %v436 = vadd.f32 %v434, %v430
    %v437 = vrcp.pop %v435
    %v438 = vmul.f32 1.0, %v437
    %v439 = vrcp.pop %v436
    %v440 = vmul.f32 1.0, %v439
    %v441 = vmul.f32 %v410, %v438
    %v442 = vmul.f32 %v412, %v440
    %v443 = vmul.f32 %v441, %v339
    %v444 = vmul.f32 %v442, %v344
    %v445 = vmul.f32 %v416, %v438
    %v446 = vmul.f32 %v418, %v440
    %v447 = vmul.f32 %v445, %v339
    %v448 = vmul.f32 %v446, %v344
    %451 = vrot.lane.b32.xlu0 %v447, 96
    %v452 = vpop.permute.xlu0 %451
    %453 = vrot.lane.b32.xlu0 %v448, 96
    %v454 = vpop.permute.xlu0 %453
    %v457 = vadd.f32 %v443, %v452
    %v458 = vadd.f32 %v444, %v454
    %v459 = vmul.f32 %v422, %v438
    %v460 = vmul.f32 %v424, %v440
    %v461 = vmul.f32 %v459, %v339
    %v462 = vmul.f32 %v460, %v344
    %465 = vrot.lane.b32.xlu0 %v461, 64
    %v466 = vpop.permute.xlu0 %465
    %467 = vrot.lane.b32.xlu0 %v462, 64
    %v468 = vpop.permute.xlu0 %467
    %v471 = vadd.f32 %v457, %v466
    %v472 = vadd.f32 %v458, %v468
    %v473 = vmul.f32 %v428, %v438
    %v474 = vmul.f32 %v430, %v440
    %v475 = vmul.f32 %v473, %v339
    %v476 = vmul.f32 %v474, %v344
    %479 = vrot.lane.b32.xlu0 %v475, 32
    %v480 = vpop.permute.xlu0 %479
    %481 = vrot.lane.b32.xlu0 %v476, 32
    %v482 = vpop.permute.xlu0 %481
    %v485 = vadd.f32 %v471, %v480
    %v486 = vadd.f32 %v472, %v482
    %487 = vst.msk [vmem:[#allocation2] sm:$0xff] %vm77, %v485
    %488 = vst.msk [vmem:[#allocation2 + $0x8] sm:$0xff] %vm77, %v486
    %491 = vrot.lane.b32.xlu0 %v393, 96
    %v492 = vpop.permute.xlu0 %491
    %493 = vrot.lane.b32.xlu0 %v394, 96
    %v494 = vpop.permute.xlu0 %493
    %v497 = vsel %vm77, %v492, 0.0
    %498 = vadd.xlane.f32.xlu0 %v497
    %v499 = vpop.xlane.xlu0 %498
    %v500 = vsel %vm77, %v494, 0.0
    %501 = vadd.xlane.f32.xlu0 %v500
    %v502 = vpop.xlane.xlu0 %501
    %505 = vrot.lane.b32.xlu0 %v349, 96
    %v506 = vpop.permute.xlu0 %505
    %507 = vrot.lane.b32.xlu0 %v350, 96
    %v508 = vpop.permute.xlu0 %507
    %v511 = vsel %vm77, %v506, 0.0
    %512 = vadd.xlane.f32.xlu0 %v511
    %v513 = vpop.xlane.xlu0 %512
    %v514 = vsel %vm77, %v508, 0.0
    %515 = vadd.xlane.f32.xlu0 %v514
    %v516 = vpop.xlane.xlu0 %515
    %519 = vrot.lane.b32.xlu0 %v365, 96
    %v520 = vpop.permute.xlu0 %519
    %521 = vrot.lane.b32.xlu0 %v366, 96
    %v522 = vpop.permute.xlu0 %521
    %v525 = vsel %vm77, %v520, 0.0
    %526 = vadd.xlane.f32.xlu0 %v525
    %v527 = vpop.xlane.xlu0 %526
    %v528 = vsel %vm77, %v522, 0.0
    %529 = vadd.xlane.f32.xlu0 %v528
    %v530 = vpop.xlane.xlu0 %529
    %533 = vrot.lane.b32.xlu0 %v379, 96
    %v534 = vpop.permute.xlu0 %533
    %535 = vrot.lane.b32.xlu0 %v380, 96
    %v536 = vpop.permute.xlu0 %535
    %v539 = vsel %vm77, %v534, 0.0
    %540 = vadd.xlane.f32.xlu0 %v539
    %v541 = vpop.xlane.xlu0 %540
    %v542 = vsel %vm77, %v536, 0.0
    %543 = vadd.xlane.f32.xlu0 %v542
    %v544 = vpop.xlane.xlu0 %543
    %v545 = vmax.f32 %v499, %v513
    %v546 = vmax.f32 %v502, %v516
    %v547 = vmax.f32 %v545, %v527
    %v548 = vmax.f32 %v546, %v530
    %v549 = vmax.f32 %v547, %v541
    %v550 = vmax.f32 %v548, %v544
    %v551 = vsub.f32 %v499, %v549
    %v552 = vsub.f32 %v502, %v550
    %v553 = vmul.f32 %v551, 1.442695
    %v554 = vpow.pop %v553
    %v555 = vmul.f32 %v552, 1.442695
    %v556 = vpow.pop %v555
    %v557 = vsub.f32 %v513, %v549
    %v558 = vsub.f32 %v516, %v550
    %v559 = vmul.f32 %v557, 1.442695
    %v560 = vpow.pop %v559
    %v561 = vmul.f32 %v558, 1.442695
    %v562 = vpow.pop %v561
    %v563 = vsub.f32 %v527, %v549
    %v564 = vsub.f32 %v530, %v550
    %v565 = vmul.f32 %v563, 1.442695
    %v566 = vpow.pop %v565
    %v567 = vmul.f32 %v564, 1.442695
    %v568 = vpow.pop %v567
    %v569 = vsub.f32 %v541, %v549
    %v570 = vsub.f32 %v544, %v550
    %v571 = vmul.f32 %v569, 1.442695
    %v572 = vpow.pop %v571
    %v573 = vmul.f32 %v570, 1.442695
    %v574 = vpow.pop %v573
    %v575 = vadd.f32 %v554, %v560
    %v576 = vadd.f32 %v556, %v562
    %v577 = vadd.f32 %v575, %v566
    %v578 = vadd.f32 %v576, %v568
    %v579 = vadd.f32 %v577, %v572
    %v580 = vadd.f32 %v578, %v574
    %v581 = vrcp.pop %v579
    %v582 = vmul.f32 1.0, %v581
    %v583 = vrcp.pop %v580
    %v584 = vmul.f32 1.0, %v583
    %v585 = vmul.f32 %v554, %v582
    %v586 = vmul.f32 %v556, %v584
    %v587 = vmul.f32 %v585, %v339
    %v588 = vmul.f32 %v586, %v344
    %v589 = vmul.f32 %v560, %v582
    %v590 = vmul.f32 %v562, %v584
    %v591 = vmul.f32 %v589, %v339
    %v592 = vmul.f32 %v590, %v344
    %595 = vrot.lane.b32.xlu0 %v591, 96
    %v596 = vpop.permute.xlu0 %595
    %597 = vrot.lane.b32.xlu0 %v592, 96
    %v598 = vpop.permute.xlu0 %597
    %v601 = vadd.f32 %v587, %v596
    %v602 = vadd.f32 %v588, %v598
    %v603 = vmul.f32 %v566, %v582
    %v604 = vmul.f32 %v568, %v584
    %v605 = vmul.f32 %v603, %v339
    %v606 = vmul.f32 %v604, %v344
    %609 = vrot.lane.b32.xlu0 %v605, 64
    %v610 = vpop.permute.xlu0 %609
    %611 = vrot.lane.b32.xlu0 %v606, 64
    %v612 = vpop.permute.xlu0 %611
    %v615 = vadd.f32 %v601, %v610
    %v616 = vadd.f32 %v602, %v612
    %v617 = vmul.f32 %v572, %v582
    %v618 = vmul.f32 %v574, %v584
    %v619 = vmul.f32 %v617, %v339
    %v620 = vmul.f32 %v618, %v344
    %623 = vrot.lane.b32.xlu0 %v619, 32
    %v624 = vpop.permute.xlu0 %623
    %625 = vrot.lane.b32.xlu0 %v620, 32
    %v626 = vpop.permute.xlu0 %625
    %v629 = vadd.f32 %v615, %v624
    %v630 = vadd.f32 %v616, %v626
    %633 = vrot.lane.b32.xlu0 %v629, 32
    %v634 = vpop.permute.xlu0 %633
    %635 = vrot.lane.b32.xlu0 %v630, 32
    %v636 = vpop.permute.xlu0 %635
    %vm639 = vcmask 523520
    %640 = vst.msk [vmem:[#allocation2] sm:$0xff] %vm639, %v634
    %641 = vst.msk [vmem:[#allocation2 + $0x8] sm:$0xff] %vm639, %v636
    %642 = vrot.lane.b32.xlu0 %v379, 64
    %v643 = vpop.permute.xlu0 %642
    %644 = vrot.lane.b32.xlu0 %v380, 64
    %v645 = vpop.permute.xlu0 %644
    %v648 = vsel %vm77, %v643, 0.0
    %649 = vadd.xlane.f32.xlu0 %v648
    %v650 = vpop.xlane.xlu0 %649
    %v651 = vsel %vm77, %v645, 0.0
    %652 = vadd.xlane.f32.xlu0 %v651
    %v653 = vpop.xlane.xlu0 %652
    %654 = vrot.lane.b32.xlu0 %v393, 64
    %v655 = vpop.permute.xlu0 %654
    %656 = vrot.lane.b32.xlu0 %v394, 64
    %v657 = vpop.permute.xlu0 %656
    %v660 = vsel %vm77, %v655, 0.0
    %661 = vadd.xlane.f32.xlu0 %v660
    %v662 = vpop.xlane.xlu0 %661
    %v663 = vsel %vm77, %v657, 0.0
    %664 = vadd.xlane.f32.xlu0 %v663
    %v665 = vpop.xlane.xlu0 %664
    %666 = vrot.lane.b32.xlu0 %v349, 64
    %v667 = vpop.permute.xlu0 %666
    %668 = vrot.lane.b32.xlu0 %v350, 64
    %v669 = vpop.permute.xlu0 %668
    %v672 = vsel %vm77, %v667, 0.0
    %673 = vadd.xlane.f32.xlu0 %v672
    %v674 = vpop.xlane.xlu0 %673
    %v675 = vsel %vm77, %v669, 0.0
    %676 = vadd.xlane.f32.xlu0 %v675
    %v677 = vpop.xlane.xlu0 %676
    %678 = vrot.lane.b32.xlu0 %v365, 64
    %v679 = vpop.permute.xlu0 %678
    %680 = vrot.lane.b32.xlu0 %v366, 64
    %v681 = vpop.permute.xlu0 %680
    %v684 = vsel %vm77, %v679, 0.0
    %685 = vadd.xlane.f32.xlu0 %v684
    %v686 = vpop.xlane.xlu0 %685
    %v687 = vsel %vm77, %v681, 0.0
    %688 = vadd.xlane.f32.xlu0 %v687
    %v689 = vpop.xlane.xlu0 %688
    %v690 = vmax.f32 %v650, %v662
    %v691 = vmax.f32 %v653, %v665
    %v692 = vmax.f32 %v690, %v674
    %v693 = vmax.f32 %v691, %v677
    %v694 = vmax.f32 %v692, %v686
    %v695 = vmax.f32 %v693, %v689
    %v696 = vsub.f32 %v650, %v694
    %v697 = vsub.f32 %v653, %v695
    %v698 = vmul.f32 %v696, 1.442695
    %v699 = vpow.pop %v698
    %v700 = vmul.f32 %v697, 1.442695
    %v701 = vpow.pop %v700
    %v702 = vsub.f32 %v662, %v694
    %v703 = vsub.f32 %v665, %v695
    %v704 = vmul.f32 %v702, 1.442695
    %v705 = vpow.pop %v704
    %v706 = vmul.f32 %v703, 1.442695
    %v707 = vpow.pop %v706
    %v708 = vsub.f32 %v674, %v694
    %v709 = vsub.f32 %v677, %v695
    %v710 = vmul.f32 %v708, 1.442695
    %v711 = vpow.pop %v710
    %v712 = vmul.f32 %v709, 1.442695
    %v713 = vpow.pop %v712
    %v714 = vsub.f32 %v686, %v694
    %v715 = vsub.f32 %v689, %v695
    %v716 = vmul.f32 %v714, 1.442695
    %v717 = vpow.pop %v716
    %v718 = vmul.f32 %v715, 1.442695
    %v719 = vpow.pop %v718
    %v720 = vadd.f32 %v699, %v705
    %v721 = vadd.f32 %v701, %v707
    %v722 = vadd.f32 %v720, %v711
    %v723 = vadd.f32 %v721, %v713
    %v724 = vadd.f32 %v722, %v717
    %v725 = vadd.f32 %v723, %v719
    %v726 = vrcp.pop %v724
    %v727 = vmul.f32 1.0, %v726
    %v728 = vrcp.pop %v725
    %v729 = vmul.f32 1.0, %v728
    %v730 = vmul.f32 %v699, %v727
    %v731 = vmul.f32 %v701, %v729
    %v732 = vmul.f32 %v730, %v339
    %v733 = vmul.f32 %v731, %v344
    %v734 = vmul.f32 %v705, %v727
    %v735 = vmul.f32 %v707, %v729
    %v736 = vmul.f32 %v734, %v339
    %v737 = vmul.f32 %v735, %v344
    %740 = vrot.lane.b32.xlu0 %v736, 96
    %v741 = vpop.permute.xlu0 %740
    %742 = vrot.lane.b32.xlu0 %v737, 96
    %v743 = vpop.permute.xlu0 %742
    %v746 = vadd.f32 %v732, %v741
    %v747 = vadd.f32 %v733, %v743
    %v748 = vmul.f32 %v711, %v727
    %v749 = vmul.f32 %v713, %v729
    %v750 = vmul.f32 %v748, %v339
    %v751 = vmul.f32 %v749, %v344
    %754 = vrot.lane.b32.xlu0 %v750, 64
    %v755 = vpop.permute.xlu0 %754
    %756 = vrot.lane.b32.xlu0 %v751, 64
    %v757 = vpop.permute.xlu0 %756
    %v760 = vadd.f32 %v746, %v755
    %v761 = vadd.f32 %v747, %v757
    %v762 = vmul.f32 %v717, %v727
    %v763 = vmul.f32 %v719, %v729
    %v764 = vmul.f32 %v762, %v339
    %v765 = vmul.f32 %v763, %v344
    %768 = vrot.lane.b32.xlu0 %v764, 32
    %v769 = vpop.permute.xlu0 %768
    %770 = vrot.lane.b32.xlu0 %v765, 32
    %v771 = vpop.permute.xlu0 %770
    %v774 = vadd.f32 %v760, %v769
    %v775 = vadd.f32 %v761, %v771
    %778 = vrot.lane.b32.xlu0 %v774, 64
    %v779 = vpop.permute.xlu0 %778
    %780 = vrot.lane.b32.xlu0 %v775, 64
    %v781 = vpop.permute.xlu0 %780
    %vm784 = vcmask 785920
    %785 = vst.msk [vmem:[#allocation2] sm:$0xff] %vm784, %v779
    %786 = vst.msk [vmem:[#allocation2 + $0x8] sm:$0xff] %vm784, %v781
    %787 = vrot.lane.b32.xlu0 %v365, 32
    %v788 = vpop.permute.xlu0 %787
    %789 = vrot.lane.b32.xlu0 %v366, 32
    %v790 = vpop.permute.xlu0 %789
    %v793 = vsel %vm77, %v788, 0.0
    %794 = vadd.xlane.f32.xlu0 %v793
    %v795 = vpop.xlane.xlu0 %794
    %v796 = vsel %vm77, %v790, 0.0
    %797 = vadd.xlane.f32.xlu0 %v796
    %v798 = vpop.xlane.xlu0 %797
    %799 = vrot.lane.b32.xlu0 %v379, 32
    %v800 = vpop.permute.xlu0 %799
    %801 = vrot.lane.b32.xlu0 %v380, 32
    %v802 = vpop.permute.xlu0 %801
    %v805 = vsel %vm77, %v800, 0.0
    %806 = vadd.xlane.f32.xlu0 %v805
    %v807 = vpop.xlane.xlu0 %806
    %v808 = vsel %vm77, %v802, 0.0
    %809 = vadd.xlane.f32.xlu0 %v808
    %v810 = vpop.xlane.xlu0 %809
    %811 = vrot.lane.b32.xlu0 %v393, 32
    %v812 = vpop.permute.xlu0 %811
    %813 = vrot.lane.b32.xlu0 %v394, 32
    %v814 = vpop.permute.xlu0 %813
    %v817 = vsel %vm77, %v812, 0.0
    %818 = vadd.xlane.f32.xlu0 %v817
    %v819 = vpop.xlane.xlu0 %818
    %v820 = vsel %vm77, %v814, 0.0
    %821 = vadd.xlane.f32.xlu0 %v820
    %v822 = vpop.xlane.xlu0 %821
    %823 = vrot.lane.b32.xlu0 %v349, 32
    %v824 = vpop.permute.xlu0 %823
    %825 = vrot.lane.b32.xlu0 %v350, 32
    %v826 = vpop.permute.xlu0 %825
    %v829 = vsel %vm77, %v824, 0.0
    %830 = vadd.xlane.f32.xlu0 %v829
    %v831 = vpop.xlane.xlu0 %830
    %v832 = vsel %vm77, %v826, 0.0
    %833 = vadd.xlane.f32.xlu0 %v832
    %v834 = vpop.xlane.xlu0 %833
    %v835 = vmax.f32 %v795, %v807
    %v836 = vmax.f32 %v798, %v810
    %v837 = vmax.f32 %v835, %v819
    %v838 = vmax.f32 %v836, %v822
    %v839 = vmax.f32 %v837, %v831
    %v840 = vmax.f32 %v838, %v834
    %v841 = vsub.f32 %v795, %v839
    %v842 = vsub.f32 %v798, %v840
    %v843 = vmul.f32 %v841, 1.442695
    %v844 = vpow.pop %v843
    %v845 = vmul.f32 %v842, 1.442695
    %v846 = vpow.pop %v845
    %v847 = vsub.f32 %v807, %v839
    %v848 = vsub.f32 %v810, %v840
    %v849 = vmul.f32 %v847, 1.442695
    %v850 = vpow.pop %v849
    %v851 = vmul.f32 %v848, 1.442695
    %v852 = vpow.pop %v851
    %v853 = vsub.f32 %v819, %v839
    %v854 = vsub.f32 %v822, %v840
    %v855 = vmul.f32 %v853, 1.442695
    %v856 = vpow.pop %v855
    %v857 = vmul.f32 %v854, 1.442695
    %v858 = vpow.pop %v857
    %v859 = vsub.f32 %v831, %v839
    %v860 = vsub.f32 %v834, %v840
    %v861 = vmul.f32 %v859, 1.442695
    %v862 = vpow.pop %v861
    %v863 = vmul.f32 %v860, 1.442695
    %v864 = vpow.pop %v863
    %v865 = vadd.f32 %v844, %v850
    %v866 = vadd.f32 %v846, %v852
    %v867 = vadd.f32 %v865, %v856
    %v868 = vadd.f32 %v866, %v858
    %v869 = vadd.f32 %v867, %v862
    %v870 = vadd.f32 %v868, %v864
    %v871 = vrcp.pop %v869
    %v872 = vmul.f32 1.0, %v871
    %v873 = vrcp.pop %v870
    %v874 = vmul.f32 1.0, %v873
    %v875 = vmul.f32 %v844, %v872
    %v876 = vmul.f32 %v846, %v874
    %v877 = vmul.f32 %v875, %v339
    %v878 = vmul.f32 %v876, %v344
    %v879 = vmul.f32 %v850, %v872
    %v880 = vmul.f32 %v852, %v874
    %v881 = vmul.f32 %v879, %v339
    %v882 = vmul.f32 %v880, %v344
    %885 = vrot.lane.b32.xlu0 %v881, 96
    %v886 = vpop.permute.xlu0 %885
    %887 = vrot.lane.b32.xlu0 %v882, 96
    %v888 = vpop.permute.xlu0 %887
    %v891 = vadd.f32 %v877, %v886
    %v892 = vadd.f32 %v878, %v888
    %v893 = vmul.f32 %v856, %v872
    %v894 = vmul.f32 %v858, %v874
    %v895 = vmul.f32 %v893, %v339
    %v896 = vmul.f32 %v894, %v344
    %899 = vrot.lane.b32.xlu0 %v895, 64
    %v900 = vpop.permute.xlu0 %899
    %901 = vrot.lane.b32.xlu0 %v896, 64
    %v902 = vpop.permute.xlu0 %901
    %v905 = vadd.f32 %v891, %v900
    %v906 = vadd.f32 %v892, %v902
    %v907 = vmul.f32 %v862, %v872
    %v908 = vmul.f32 %v864, %v874
    %v909 = vmul.f32 %v907, %v339
    %v910 = vmul.f32 %v908, %v344
    %913 = vrot.lane.b32.xlu0 %v909, 32
    %v914 = vpop.permute.xlu0 %913
    %915 = vrot.lane.b32.xlu0 %v910, 32
    %v916 = vpop.permute.xlu0 %915
    %v919 = vadd.f32 %v905, %v914
    %v920 = vadd.f32 %v906, %v916
    %923 = vrot.lane.b32.xlu0 %v919, 96
    %v924 = vpop.permute.xlu0 %923
    %925 = vrot.lane.b32.xlu0 %v920, 96
    %v926 = vpop.permute.xlu0 %925
    %vm929 = vcmask 1048320
    %930 = vst.msk [vmem:[#allocation2] sm:$0xff] %vm929, %v924
    %931 = vst.msk [vmem:[#allocation2 + $0x8] sm:$0xff] %vm929, %v926
    %v932 = vld [vmem:[#allocation2] sm:$0xff]
    %v933 = vld [vmem:[#allocation2 + $0x8] sm:$0xff]
    %v934 = vld [vmem:[%s9] sm:$0xff]
    %v935 = vld [vmem:[%s9 + $0x8] sm:$0xff]
    %v936 = vld [vmem:[%s9 + $0x10] sm:$0xff]
    %v937 = vld [vmem:[%s9 + $0x18] sm:$0xff]
    %v938 = vld [vmem:[%s9 + $0x20] sm:$0xff]
    %v939 = vld [vmem:[%s9 + $0x28] sm:$0xff]
    %v940 = vld [vmem:[%s9 + $0x30] sm:$0xff]
    %v941 = vld [vmem:[%s9 + $0x38] sm:$0xff]
    %v942 = vld [vmem:[%s9 + $0x40] sm:$0xff]
    %v943 = vld [vmem:[%s9 + $0x48] sm:$0xff]
    %v944 = vld [vmem:[%s9 + $0x50] sm:$0xff]
    %v945 = vld [vmem:[%s9 + $0x58] sm:$0xff]
    %v946 = vld [vmem:[%s9 + $0x60] sm:$0xff]
    %v947 = vld [vmem:[%s9 + $0x68] sm:$0xff]
    %v948 = vld [vmem:[%s9 + $0x70] sm:$0xff]
    %v949 = vld [vmem:[%s9 + $0x78] sm:$0xff]
    %v950 = vld [vmem:[%s9 + $0x80] sm:$0xff]
    %v951 = vld [vmem:[%s9 + $0x88] sm:$0xff]
    %v952 = vld [vmem:[%s9 + $0x90] sm:$0xff]
    %v953 = vld [vmem:[%s9 + $0x98] sm:$0xff]
    %v954 = vld [vmem:[%s9 + $0xa0] sm:$0xff]
    %v955 = vld [vmem:[%s9 + $0xa8] sm:$0xff]
    %v956 = vld [vmem:[%s9 + $0xb0] sm:$0xff]
    %v957 = vld [vmem:[%s9 + $0xb8] sm:$0xff]
    %v958 = vld [vmem:[%s9 + $0xc0] sm:$0xff]
    %v959 = vld [vmem:[%s9 + $0xc8] sm:$0xff]
    %v960 = vld [vmem:[%s9 + $0xd0] sm:$0xff]
    %v961 = vld [vmem:[%s9 + $0xd8] sm:$0xff]
    %v962 = vld [vmem:[%s9 + $0xe0] sm:$0xff]
    %v963 = vld [vmem:[%s9 + $0xe8] sm:$0xff]
    %v964 = vld [vmem:[%s9 + $0xf0] sm:$0xff]
    %v965 = vld [vmem:[%s9 + $0xf8] sm:$0xff]
    %v966 = vld [vmem:[%s9 + $0x100] sm:$0xff]
    %v967 = vld [vmem:[%s9 + $0x108] sm:$0xff]
    %v968 = vld [vmem:[%s9 + $0x110] sm:$0xff]
    %v969 = vld [vmem:[%s9 + $0x118] sm:$0xff]
    %v970 = vld [vmem:[%s9 + $0x120] sm:$0xff]
    %v971 = vld [vmem:[%s9 + $0x128] sm:$0xff]
    %v972 = vld [vmem:[%s9 + $0x130] sm:$0xff]
    %v973 = vld [vmem:[%s9 + $0x138] sm:$0xff]
    %v974 = vld [vmem:[%s9 + $0x140] sm:$0xff]
    %v975 = vld [vmem:[%s9 + $0x148] sm:$0xff]
    %v976 = vld [vmem:[%s9 + $0x150] sm:$0xff]
    %v977 = vld [vmem:[%s9 + $0x158] sm:$0xff]
    %v978 = vld [vmem:[%s9 + $0x160] sm:$0xff]
    %v979 = vld [vmem:[%s9 + $0x168] sm:$0xff]
    %v980 = vld [vmem:[%s9 + $0x170] sm:$0xff]
    %v981 = vld [vmem:[%s9 + $0x178] sm:$0xff]
    %v982 = vld [vmem:[%s9 + $0x180] sm:$0xff]
    %v983 = vld [vmem:[%s9 + $0x188] sm:$0xff]
    %v984 = vld [vmem:[%s9 + $0x190] sm:$0xff]
    %v985 = vld [vmem:[%s9 + $0x198] sm:$0xff]
    %v986 = vld [vmem:[%s9 + $0x1a0] sm:$0xff]
    %v987 = vld [vmem:[%s9 + $0x1a8] sm:$0xff]
    %v988 = vld [vmem:[%s9 + $0x1b0] sm:$0xff]
    %v989 = vld [vmem:[%s9 + $0x1b8] sm:$0xff]
    %v990 = vld [vmem:[%s9 + $0x1c0] sm:$0xff]
    %v991 = vld [vmem:[%s9 + $0x1c8] sm:$0xff]
    %v992 = vld [vmem:[%s9 + $0x1d0] sm:$0xff]
    %v993 = vld [vmem:[%s9 + $0x1d8] sm:$0xff]
    %v994 = vld [vmem:[%s9 + $0x1e0] sm:$0xff]
    %v995 = vld [vmem:[%s9 + $0x1e8] sm:$0xff]
    %v996 = vld [vmem:[%s9 + $0x1f0] sm:$0xff]
    %v997 = vld [vmem:[%s9 + $0x1f8] sm:$0xff]
    %v998 = vld [vmem:[%s10] sm:$0xf]
    %v1000 = vlaneseq
    %v1001 = vshrl.u32 %v1000, 7
    %v1002 = vsub.s32 0, %v1001
    %v1003 = vrot.slane %v998, %v1002
    %v1004 = vlaneseq
    %v1005 = vshrl.u32 %v1004, 7
    %v1006 = vsub.s32 1, %v1005
    %v1007 = vrot.slane %v998, %v1006
    %v1008 = vlaneseq
    %v1009 = vshrl.u32 %v1008, 7
    %v1010 = vsub.s32 2, %v1009
    %v1011 = vrot.slane %v998, %v1010
    %v1012 = vlaneseq
    %v1013 = vshrl.u32 %v1012, 7
    %v1014 = vsub.s32 3, %v1013
    %v1015 = vrot.slane %v998, %v1014
    %1020 = vmatprep.subr.mxu0 %v935
    %1021 = vmatpush1.msra.mxu0 %v934
    %1022 = vmatprep.subr.mxu0 %v939
    %1023 = vmatpush1.msra.mxu0 %v938
    %1024 = vmatprep.subr.mxu0 %v943
    %1025 = vmatpush1.msra.mxu0 %v942
    %1026 = vmatprep.subr.mxu0 %v947
    %1027 = vmatpush1.msra.mxu0 %v946
    %1028 = vmatprep.subr.mxu0 %v951
    %1029 = vmatpush1.msra.mxu0 %v950
    %1030 = vmatprep.subr.mxu0 %v955
    %1031 = vmatpush1.msra.mxu0 %v954
    %1032 = vmatprep.subr.mxu0 %v959
    %1033 = vmatpush1.msra.mxu0 %v958
    %1034 = vmatprep.subr.mxu0 %v963
    %1035 = vmatpush1.msra.mxu0 %v962
    %1036 = vmatprep.subr.mxu0 %v967
    %1037 = vmatpush1.msra.mxu0 %v966
    %1038 = vmatprep.subr.mxu0 %v971
    %1039 = vmatpush1.msra.mxu0 %v970
    %1040 = vmatprep.subr.mxu0 %v975
    %1041 = vmatpush1.msra.mxu0 %v974
    %1042 = vmatprep.subr.mxu0 %v979
    %1043 = vmatpush1.msra.mxu0 %v978
    %1044 = vmatprep.subr.mxu0 %v983
    %1045 = vmatpush1.msra.mxu0 %v982
    %1046 = vmatprep.subr.mxu0 %v987
    %1047 = vmatpush1.msra.mxu0 %v986
    %1048 = vmatprep.subr.mxu0 %v991
    %1049 = vmatpush1.msra.mxu0 %v990
    %1050 = vmatprep.subr.mxu0 %v995
    %1051 = vmatpush1.msra.mxu0 %v994
    %1052 = vmatprep.subr.mxu0 0.0
    %1053 = vmatpush1.msra.mxu0 0.0
    %1054 = vmatprep.subr.mxu0 0.0
    %1055 = vmatpush1.msra.mxu0 0.0
    %1056 = vmatprep.subr.mxu0 0.0
    %1057 = vmatpush1.msra.mxu0 0.0
    %1058 = vmatprep.subr.mxu0 0.0
    %1059 = vmatpush1.msra.mxu0 0.0
    %1060 = vmatprep.subr.mxu0 0.0
    %1061 = vmatpush1.msra.mxu0 0.0
    %1062 = vmatprep.subr.mxu0 0.0
    %1063 = vmatpush1.msra.mxu0 0.0
    %1064 = vmatprep.subr.mxu0 0.0
    %1065 = vmatpush1.msra.mxu0 0.0
    %1066 = vmatprep.subr.mxu0 0.0
    %1067 = vmatpush1.msra.mxu0 0.0
    %1068 = vmatprep.subr.mxu0 0.0
    %1069 = vmatpush1.msra.mxu0 0.0
    %1070 = vmatprep.subr.mxu0 0.0
    %1071 = vmatpush1.msra.mxu0 0.0
    %1072 = vmatprep.subr.mxu0 0.0
    %1073 = vmatpush1.msra.mxu0 0.0
    %1074 = vmatprep.subr.mxu0 0.0
    %1075 = vmatpush1.msra.mxu0 0.0
    %1076 = vmatprep.subr.mxu0 0.0
    %1077 = vmatpush1.msra.mxu0 0.0
    %1078 = vmatprep.subr.mxu0 0.0
    %1079 = vmatpush1.msra.mxu0 0.0
    %1080 = vmatprep.subr.mxu0 0.0
    %1081 = vmatpush1.msra.mxu0 0.0
    %1082 = vmatprep.subr.mxu0 0.0
    %1083 = vmatpush1.msra.mxu0 0.0
    %1084 = vmatprep.mubr.f32.mxu0 0.0
    %1085 = vmatmul.mubr.f32.gmra.mrb[0].mxu0 %v932
    %v1086 = vpop.f32.mrb[0].mxu0
    %v1087 = vadd.f32 %v1003, %v1086
    %v1088 = vpop.f32.mrb[0].mxu0
    %v1089 = vadd.f32 %v1007, %v1088
    %1090 = vmatprep.mubr.f32.mxu0 0.0
    %1091 = vmatmul.mubr.f32.gmra.mrb[0].mxu0 %v933
    %v1092 = vpop.f32.mrb[0].mxu0
    %v1093 = vadd.f32 %v1003, %v1092
    %v1094 = vpop.f32.mrb[0].mxu0
    %v1095 = vadd.f32 %v1007, %v1094
    %1096 = vdwg.mxu0
    %1097 = vmatprep.subr.mxu0 %v937
    %1098 = vmatpush1.msra.mxu0 %v936
    %1099 = vmatprep.subr.mxu0 %v941
    %1100 = vmatpush1.msra.mxu0 %v940
    %1101 = vmatprep.subr.mxu0 %v945
    %1102 = vmatpush1.msra.mxu0 %v944
    %1103 = vmatprep.subr.mxu0 %v949
    %1104 = vmatpush1.msra.mxu0 %v948
    %1105 = vmatprep.subr.mxu0 %v953
    %1106 = vmatpush1.msra.mxu0 %v952
    %1107 = vmatprep.subr.mxu0 %v957
    %1108 = vmatpush1.msra.mxu0 %v956
    %1109 = vmatprep.subr.mxu0 %v961
    %1110 = vmatpush1.msra.mxu0 %v960
    %1111 = vmatprep.subr.mxu0 %v965
    %1112 = vmatpush1.msra.mxu0 %v964
    %1113 = vmatprep.subr.mxu0 %v969
    %1114 = vmatpush1.msra.mxu0 %v968
    %1115 = vmatprep.subr.mxu0 %v973
    %1116 = vmatpush1.msra.mxu0 %v972
    %1117 = vmatprep.subr.mxu0 %v977
    %1118 = vmatpush1.msra.mxu0 %v976
    %1119 = vmatprep.subr.mxu0 %v981
    %1120 = vmatpush1.msra.mxu0 %v980
    %1121 = vmatprep.subr.mxu0 %v985
    %1122 = vmatpush1.msra.mxu0 %v984
    %1123 = vmatprep.subr.mxu0 %v989
    %1124 = vmatpush1.msra.mxu0 %v988
    %1125 = vmatprep.subr.mxu0 %v993
    %1126 = vmatpush1.msra.mxu0 %v992
    %1127 = vmatprep.subr.mxu0 %v997
    %1128 = vmatpush1.msra.mxu0 %v996
    %1129 = vmatprep.subr.mxu0 0.0
    %1130 = vmatpush1.msra.mxu0 0.0
    %1131 = vmatprep.subr.mxu0 0.0
    %1132 = vmatpush1.msra.mxu0 0.0
    %1133 = vmatprep.subr.mxu0 0.0
    %1134 = vmatpush1.msra.mxu0 0.0
    %1135 = vmatprep.subr.mxu0 0.0
    %1136 = vmatpush1.msra.mxu0 0.0
    %1137 = vmatprep.subr.mxu0 0.0
    %1138 = vmatpush1.msra.mxu0 0.0
    %1139 = vmatprep.subr.mxu0 0.0
    %1140 = vmatpush1.msra.mxu0 0.0
    %1141 = vmatprep.subr.mxu0 0.0
    %1142 = vmatpush1.msra.mxu0 0.0
    %1143 = vmatprep.subr.mxu0 0.0
    %1144 = vmatpush1.msra.mxu0 0.0
    %1145 = vmatprep.subr.mxu0 0.0
    %1146 = vmatpush1.msra.mxu0 0.0
    %1147 = vmatprep.subr.mxu0 0.0
    %1148 = vmatpush1.msra.mxu0 0.0
    %1149 = vmatprep.subr.mxu0 0.0
    %1150 = vmatpush1.msra.mxu0 0.0
    %1151 = vmatprep.subr.mxu0 0.0
    %1152 = vmatpush1.msra.mxu0 0.0
    %1153 = vmatprep.subr.mxu0 0.0
    %1154 = vmatpush1.msra.mxu0 0.0
    %1155 = vmatprep.subr.mxu0 0.0
    %1156 = vmatpush1.msra.mxu0 0.0
    %1157 = vmatprep.subr.mxu0 0.0
    %1158 = vmatpush1.msra.mxu0 0.0
    %1159 = vmatprep.subr.mxu0 0.0
    %1160 = vmatpush1.msra.mxu0 0.0
    %1161 = vmatprep.mubr.f32.mxu0 0.0
    %1162 = vmatmul.mubr.f32.gmra.mrb[0].mxu0 %v932
    %v1163 = vpop.f32.mrb[0].mxu0
    %v1164 = vadd.f32 %v1011, %v1163
    %v1165 = vpop.f32.mrb[0].mxu0
    %v1166 = vadd.f32 %v1015, %v1165
    %1167 = vmatprep.mubr.f32.mxu0 0.0
    %1168 = vmatmul.mubr.f32.gmra.mrb[0].mxu0 %v933
    %v1169 = vpop.f32.mrb[0].mxu0
    %v1170 = vadd.f32 %v1011, %v1169
    %v1171 = vpop.f32.mrb[0].mxu0
    %v1172 = vadd.f32 %v1015, %v1171
    %1173 = vdwg.mxu0
    %v1174 = vmul.f32 %v1087, 0.5
    %v1175 = vmul.f32 %v1089, 0.5
    %v1176 = vmul.f32 %v1164, 0.5
    %v1177 = vmul.f32 %v1166, 0.5
    %v1178 = vmul.f32 %v1093, 0.5
    %v1179 = vmul.f32 %v1095, 0.5
    %v1180 = vmul.f32 %v1170, 0.5
    %v1181 = vmul.f32 %v1172, 0.5
    %v1182 = vmul.f32 %v1087, 0.044715
    %v1183 = vmul.f32 %v1089, 0.044715
    %v1184 = vmul.f32 %v1164, 0.044715
    %v1185 = vmul.f32 %v1166, 0.044715
    %v1186 = vmul.f32 %v1093, 0.044715
    %v1187 = vmul.f32 %v1095, 0.044715
    %v1188 = vmul.f32 %v1170, 0.044715
    %v1189 = vmul.f32 %v1172, 0.044715
    %v1190 = vmul.f32 %v1182, %v1087
    %v1191 = vmul.f32 %v1183, %v1089
    %v1192 = vmul.f32 %v1184, %v1164
    %v1193 = vmul.f32 %v1185, %v1166
    %v1194 = vmul.f32 %v1186, %v1093
    %v1195 = vmul.f32 %v1187, %v1095
    %v1196 = vmul.f32 %v1188, %v1170
    %v1197 = vmul.f32 %v1189, %v1172
    %v1198 = vmul.f32 %v1190, %v1087
    %v1199 = vmul.f32 %v1191, %v1089
    %v1200 = vmul.f32 %v1192, %v1164
    %v1201 = vmul.f32 %v1193, %v1166
    %v1202 = vmul.f32 %v1194, %v1093
    %v1203 = vmul.f32 %v1195, %v1095
    %v1204 = vmul.f32 %v1196, %v1170
    %v1205 = vmul.f32 %v1197, %v1172
    %v1206 = vadd.f32 %v1087, %v1198
    %v1207 = vadd.f32 %v1089, %v1199
    %v1208 = vadd.f32 %v1164, %v1200
    %v1209 = vadd.f32 %v1166, %v1201
    %v1210 = vadd.f32 %v1093, %v1202
    %v1211 = vadd.f32 %v1095, %v1203
    %v1212 = vadd.f32 %v1170, %v1204
    %v1213 = vadd.f32 %v1172, %v1205
    %v1214 = vmul.f32 %v1206, 0.7978846
    %v1215 = vmul.f32 %v1207, 0.7978846
    %v1216 = vmul.f32 %v1208, 0.7978846
    %v1217 = vmul.f32 %v1209, 0.7978846
    %v1218 = vmul.f32 %v1210, 0.7978846
    %v1219 = vmul.f32 %v1211, 0.7978846
    %v1220 = vmul.f32 %v1212, 0.7978846
    %v1221 = vmul.f32 %v1213, 0.7978846
    %v1222 = vtanh.pop %v1214
    %v1223 = vtanh.pop %v1215
    %v1224 = vtanh.pop %v1216
    %v1225 = vtanh.pop %v1217
    %v1226 = vtanh.pop %v1218
    %v1227 = vtanh.pop %v1219
    %v1228 = vtanh.pop %v1220
    %v1229 = vtanh.pop %v1221
    %v1230 = vadd.f32 %v1222, 1.0
    %v1231 = vadd.f32 %v1223, 1.0
    %v1232 = vadd.f32 %v1224, 1.0
    %v1233 = vadd.f32 %v1225, 1.0
    %v1234 = vadd.f32 %v1226, 1.0
    %v1235 = vadd.f32 %v1227, 1.0
    %v1236 = vadd.f32 %v1228, 1.0
    %v1237 = vadd.f32 %v1229, 1.0
    %v1238 = vmul.f32 %v1174, %v1230
    %v1239 = vmul.f32 %v1175, %v1231
    %v1240 = vmul.f32 %v1176, %v1232
    %v1241 = vmul.f32 %v1177, %v1233
    %v1242 = vmul.f32 %v1178, %v1234
    %v1243 = vmul.f32 %v1179, %v1235
    %v1244 = vmul.f32 %v1180, %v1236
    %v1245 = vmul.f32 %v1181, %v1237
    %v1246 = vld [vmem:[#allocation3] sm:$0xff]
    %v1247 = vld [vmem:[#allocation3 + $0x8] sm:$0xff]
    %v1248 = vld [vmem:[#allocation3 + $0x10] sm:$0xff]
    %v1249 = vld [vmem:[#allocation3 + $0x18] sm:$0xff]
    %v1250 = vld [vmem:[#allocation3 + $0x20] sm:$0xff]
    %v1251 = vld [vmem:[#allocation3 + $0x28] sm:$0xff]
    %v1252 = vld [vmem:[#allocation3 + $0x30] sm:$0xff]
    %v1253 = vld [vmem:[#allocation3 + $0x38] sm:$0xff]
    %v1254 = vld [vmem:[#allocation3 + $0x40] sm:$0xff]
    %v1255 = vld [vmem:[#allocation3 + $0x48] sm:$0xff]
    %v1256 = vld [vmem:[#allocation3 + $0x50] sm:$0xff]
    %v1257 = vld [vmem:[#allocation3 + $0x58] sm:$0xff]
    %v1258 = vld [vmem:[#allocation3 + $0x60] sm:$0xff]
    %v1259 = vld [vmem:[#allocation3 + $0x68] sm:$0xff]
    %v1260 = vld [vmem:[#allocation3 + $0x70] sm:$0xff]
    %v1261 = vld [vmem:[#allocation3 + $0x78] sm:$0xff]
    %v1262 = vld [vmem:[#allocation3 + $0x80] sm:$0xff]
    %v1263 = vld [vmem:[#allocation3 + $0x88] sm:$0xff]
    %v1264 = vld [vmem:[#allocation3 + $0x90] sm:$0xff]
    %v1265 = vld [vmem:[#allocation3 + $0x98] sm:$0xff]
    %v1266 = vld [vmem:[#allocation3 + $0xa0] sm:$0xff]
    %v1267 = vld [vmem:[#allocation3 + $0xa8] sm:$0xff]
    %v1268 = vld [vmem:[#allocation3 + $0xb0] sm:$0xff]
    %v1269 = vld [vmem:[#allocation3 + $0xb8] sm:$0xff]
    %v1270 = vld [vmem:[#allocation3 + $0xc0] sm:$0xff]
    %v1271 = vld [vmem:[#allocation3 + $0xc8] sm:$0xff]
    %v1272 = vld [vmem:[#allocation3 + $0xd0] sm:$0xff]
    %v1273 = vld [vmem:[#allocation3 + $0xd8] sm:$0xff]
    %v1274 = vld [vmem:[#allocation3 + $0xe0] sm:$0xff]
    %v1275 = vld [vmem:[#allocation3 + $0xe8] sm:$0xff]
    %v1276 = vld [vmem:[#allocation3 + $0xf0] sm:$0xff]
    %v1277 = vld [vmem:[#allocation3 + $0xf8] sm:$0xff]
    %v1278 = vld [vmem:[#allocation3 + $0x100] sm:$0xff]
    %v1279 = vld [vmem:[#allocation3 + $0x108] sm:$0xff]
    %v1280 = vld [vmem:[#allocation3 + $0x110] sm:$0xff]
    %v1281 = vld [vmem:[#allocation3 + $0x118] sm:$0xff]
    %v1282 = vld [vmem:[#allocation3 + $0x120] sm:$0xff]
    %v1283 = vld [vmem:[#allocation3 + $0x128] sm:$0xff]
    %v1284 = vld [vmem:[#allocation3 + $0x130] sm:$0xff]
    %v1285 = vld [vmem:[#allocation3 + $0x138] sm:$0xff]
    %v1286 = vld [vmem:[#allocation3 + $0x140] sm:$0xff]
    %v1287 = vld [vmem:[#allocation3 + $0x148] sm:$0xff]
    %v1288 = vld [vmem:[#allocation3 + $0x150] sm:$0xff]
    %v1289 = vld [vmem:[#allocation3 + $0x158] sm:$0xff]
    %v1290 = vld [vmem:[#allocation3 + $0x160] sm:$0xff]
    %v1291 = vld [vmem:[#allocation3 + $0x168] sm:$0xff]
    %v1292 = vld [vmem:[#allocation3 + $0x170] sm:$0xff]
    %v1293 = vld [vmem:[#allocation3 + $0x178] sm:$0xff]
    %v1294 = vld [vmem:[#allocation3 + $0x180] sm:$0xff]
    %v1295 = vld [vmem:[#allocation3 + $0x188] sm:$0xff]
    %v1296 = vld [vmem:[#allocation3 + $0x190] sm:$0xff]
    %v1297 = vld [vmem:[#allocation3 + $0x198] sm:$0xff]
    %v1298 = vld [vmem:[#allocation3 + $0x1a0] sm:$0xff]
    %v1299 = vld [vmem:[#allocation3 + $0x1a8] sm:$0xff]
    %v1300 = vld [vmem:[#allocation3 + $0x1b0] sm:$0xff]
    %v1301 = vld [vmem:[#allocation3 + $0x1b8] sm:$0xff]
    %v1302 = vld [vmem:[#allocation3 + $0x1c0] sm:$0xff]
    %v1303 = vld [vmem:[#allocation3 + $0x1c8] sm:$0xff]
    %v1304 = vld [vmem:[#allocation3 + $0x1d0] sm:$0xff]
    %v1305 = vld [vmem:[#allocation3 + $0x1d8] sm:$0xff]
    %v1306 = vld [vmem:[#allocation3 + $0x1e0] sm:$0xff]
    %v1307 = vld [vmem:[#allocation3 + $0x1e8] sm:$0xff]
    %v1308 = vld [vmem:[#allocation3 + $0x1f0] sm:$0xff]
    %v1309 = vld [vmem:[#allocation3 + $0x1f8] sm:$0xff]
    %v1310 = vld [vmem:[#allocation3 + $0x200] sm:$0xff]
    %v1311 = vld [vmem:[#allocation3 + $0x208] sm:$0xff]
    %v1312 = vld [vmem:[#allocation3 + $0x210] sm:$0xff]
    %v1313 = vld [vmem:[#allocation3 + $0x218] sm:$0xff]
    %v1314 = vld [vmem:[#allocation3 + $0x220] sm:$0xff]
    %v1315 = vld [vmem:[#allocation3 + $0x228] sm:$0xff]
    %v1316 = vld [vmem:[#allocation3 + $0x230] sm:$0xff]
    %v1317 = vld [vmem:[#allocation3 + $0x238] sm:$0xff]
    %v1318 = vld [vmem:[#allocation3 + $0x240] sm:$0xff]
    %v1319 = vld [vmem:[#allocation3 + $0x248] sm:$0xff]
    %v1320 = vld [vmem:[#allocation3 + $0x250] sm:$0xff]
    %v1321 = vld [vmem:[#allocation3 + $0x258] sm:$0xff]
    %v1322 = vld [vmem:[#allocation3 + $0x260] sm:$0xff]
    %v1323 = vld [vmem:[#allocation3 + $0x268] sm:$0xff]
    %v1324 = vld [vmem:[#allocation3 + $0x270] sm:$0xff]
    %v1325 = vld [vmem:[#allocation3 + $0x278] sm:$0xff]
    %v1326 = vld [vmem:[#allocation3 + $0x280] sm:$0xff]
    %v1327 = vld [vmem:[#allocation3 + $0x288] sm:$0xff]
    %v1328 = vld [vmem:[#allocation3 + $0x290] sm:$0xff]
    %v1329 = vld [vmem:[#allocation3 + $0x298] sm:$0xff]
    %v1330 = vld [vmem:[#allocation3 + $0x2a0] sm:$0xff]
    %v1331 = vld [vmem:[#allocation3 + $0x2a8] sm:$0xff]
    %v1332 = vld [vmem:[#allocation3 + $0x2b0] sm:$0xff]
    %v1333 = vld [vmem:[#allocation3 + $0x2b8] sm:$0xff]
    %v1334 = vld [vmem:[#allocation3 + $0x2c0] sm:$0xff]
    %v1335 = vld [vmem:[#allocation3 + $0x2c8] sm:$0xff]
    %v1336 = vld [vmem:[#allocation3 + $0x2d0] sm:$0xff]
    %v1337 = vld [vmem:[#allocation3 + $0x2d8] sm:$0xff]
    %v1338 = vld [vmem:[#allocation3 + $0x2e0] sm:$0xff]
    %v1339 = vld [vmem:[#allocation3 + $0x2e8] sm:$0xff]
    %v1340 = vld [vmem:[#allocation3 + $0x2f0] sm:$0xff]
    %v1341 = vld [vmem:[#allocation3 + $0x2f8] sm:$0xff]
    %v1342 = vld [vmem:[#allocation3 + $0x300] sm:$0xff]
    %v1343 = vld [vmem:[#allocation3 + $0x308] sm:$0xff]
    %v1344 = vld [vmem:[#allocation3 + $0x310] sm:$0xff]
    %v1345 = vld [vmem:[#allocation3 + $0x318] sm:$0xff]
    %v1346 = vld [vmem:[#allocation3 + $0x320] sm:$0xff]
    %v1347 = vld [vmem:[#allocation3 + $0x328] sm:$0xff]
    %v1348 = vld [vmem:[#allocation3 + $0x330] sm:$0xff]
    %v1349 = vld [vmem:[#allocation3 + $0x338] sm:$0xff]
    %v1350 = vld [vmem:[#allocation3 + $0x340] sm:$0xff]
    %v1351 = vld [vmem:[#allocation3 + $0x348] sm:$0xff]
    %v1352 = vld [vmem:[#allocation3 + $0x350] sm:$0xff]
    %v1353 = vld [vmem:[#allocation3 + $0x358] sm:$0xff]
    %v1354 = vld [vmem:[#allocation3 + $0x360] sm:$0xff]
    %v1355 = vld [vmem:[#allocation3 + $0x368] sm:$0xff]
    %v1356 = vld [vmem:[#allocation3 + $0x370] sm:$0xff]
    %v1357 = vld [vmem:[#allocation3 + $0x378] sm:$0xff]
    %v1358 = vld [vmem:[#allocation3 + $0x380] sm:$0xff]
    %v1359 = vld [vmem:[#allocation3 + $0x388] sm:$0xff]
    %v1360 = vld [vmem:[#allocation3 + $0x390] sm:$0xff]
    %v1361 = vld [vmem:[#allocation3 + $0x398] sm:$0xff]
    %v1362 = vld [vmem:[#allocation3 + $0x3a0] sm:$0xff]
    %v1363 = vld [vmem:[#allocation3 + $0x3a8] sm:$0xff]
    %v1364 = vld [vmem:[#allocation3 + $0x3b0] sm:$0xff]
    %v1365 = vld [vmem:[#allocation3 + $0x3b8] sm:$0xff]
    %v1366 = vld [vmem:[#allocation3 + $0x3c0] sm:$0xff]
    %v1367 = vld [vmem:[#allocation3 + $0x3c8] sm:$0xff]
    %v1368 = vld [vmem:[#allocation3 + $0x3d0] sm:$0xff]
    %v1369 = vld [vmem:[#allocation3 + $0x3d8] sm:$0xff]
    %v1370 = vld [vmem:[#allocation3 + $0x3e0] sm:$0xff]
    %v1371 = vld [vmem:[#allocation3 + $0x3e8] sm:$0xff]
    %v1372 = vld [vmem:[#allocation3 + $0x3f0] sm:$0xff]
    %v1373 = vld [vmem:[#allocation3 + $0x3f8] sm:$0xff]
    %v1374 = vld [vmem:[#allocation3 + $0x400] sm:$0xff]
    %v1375 = vld [vmem:[#allocation3 + $0x408] sm:$0xff]
    %v1376 = vld [vmem:[#allocation3 + $0x410] sm:$0xff]
    %v1377 = vld [vmem:[#allocation3 + $0x418] sm:$0xff]
    %v1378 = vld [vmem:[#allocation3 + $0x420] sm:$0xff]
    %v1379 = vld [vmem:[#allocation3 + $0x428] sm:$0xff]
    %v1380 = vld [vmem:[#allocation3 + $0x430] sm:$0xff]
    %v1381 = vld [vmem:[#allocation3 + $0x438] sm:$0xff]
    %v1382 = vld [vmem:[#allocation3 + $0x440] sm:$0xff]
    %v1383 = vld [vmem:[#allocation3 + $0x448] sm:$0xff]
    %v1384 = vld [vmem:[#allocation3 + $0x450] sm:$0xff]
    %v1385 = vld [vmem:[#allocation3 + $0x458] sm:$0xff]
    %v1386 = vld [vmem:[#allocation3 + $0x460] sm:$0xff]
    %v1387 = vld [vmem:[#allocation3 + $0x468] sm:$0xff]
    %v1388 = vld [vmem:[#allocation3 + $0x470] sm:$0xff]
    %v1389 = vld [vmem:[#allocation3 + $0x478] sm:$0xff]
    %v1390 = vld [vmem:[#allocation3 + $0x480] sm:$0xff]
    %v1391 = vld [vmem:[#allocation3 + $0x488] sm:$0xff]
    %v1392 = vld [vmem:[#allocation3 + $0x490] sm:$0xff]
    %v1393 = vld [vmem:[#allocation3 + $0x498] sm:$0xff]
    %v1394 = vld [vmem:[#allocation3 + $0x4a0] sm:$0xff]
    %v1395 = vld [vmem:[#allocation3 + $0x4a8] sm:$0xff]
    %v1396 = vld [vmem:[#allocation3 + $0x4b0] sm:$0xff]
    %v1397 = vld [vmem:[#allocation3 + $0x4b8] sm:$0xff]
    %v1398 = vld [vmem:[#allocation3 + $0x4c0] sm:$0xff]
    %v1399 = vld [vmem:[#allocation3 + $0x4c8] sm:$0xff]
    %v1400 = vld [vmem:[#allocation3 + $0x4d0] sm:$0xff]
    %v1401 = vld [vmem:[#allocation3 + $0x4d8] sm:$0xff]
    %v1402 = vld [vmem:[#allocation3 + $0x4e0] sm:$0xff]
    %v1403 = vld [vmem:[#allocation3 + $0x4e8] sm:$0xff]
    %v1404 = vld [vmem:[#allocation3 + $0x4f0] sm:$0xff]
    %v1405 = vld [vmem:[#allocation3 + $0x4f8] sm:$0xff]
    %v1406 = vld [vmem:[#allocation3 + $0x500] sm:$0xff]
    %v1407 = vld [vmem:[#allocation3 + $0x508] sm:$0xff]
    %v1408 = vld [vmem:[#allocation3 + $0x510] sm:$0xff]
    %v1409 = vld [vmem:[#allocation3 + $0x518] sm:$0xff]
    %v1410 = vld [vmem:[#allocation3 + $0x520] sm:$0xff]
    %v1411 = vld [vmem:[#allocation3 + $0x528] sm:$0xff]
    %v1412 = vld [vmem:[#allocation3 + $0x530] sm:$0xff]
    %v1413 = vld [vmem:[#allocation3 + $0x538] sm:$0xff]
    %v1414 = vld [vmem:[#allocation3 + $0x540] sm:$0xff]
    %v1415 = vld [vmem:[#allocation3 + $0x548] sm:$0xff]
    %v1416 = vld [vmem:[#allocation3 + $0x550] sm:$0xff]
    %v1417 = vld [vmem:[#allocation3 + $0x558] sm:$0xff]
    %v1418 = vld [vmem:[#allocation3 + $0x560] sm:$0xff]
    %v1419 = vld [vmem:[#allocation3 + $0x568] sm:$0xff]
    %v1420 = vld [vmem:[#allocation3 + $0x570] sm:$0xff]
    %v1421 = vld [vmem:[#allocation3 + $0x578] sm:$0xff]
    %v1422 = vld [vmem:[#allocation3 + $0x580] sm:$0xff]
    %v1423 = vld [vmem:[#allocation3 + $0x588] sm:$0xff]
    %v1424 = vld [vmem:[#allocation3 + $0x590] sm:$0xff]
    %v1425 = vld [vmem:[#allocation3 + $0x598] sm:$0xff]
    %v1426 = vld [vmem:[#allocation3 + $0x5a0] sm:$0xff]
    %v1427 = vld [vmem:[#allocation3 + $0x5a8] sm:$0xff]
    %v1428 = vld [vmem:[#allocation3 + $0x5b0] sm:$0xff]
    %v1429 = vld [vmem:[#allocation3 + $0x5b8] sm:$0xff]
    %v1430 = vld [vmem:[#allocation3 + $0x5c0] sm:$0xff]
    %v1431 = vld [vmem:[#allocation3 + $0x5c8] sm:$0xff]
    %v1432 = vld [vmem:[#allocation3 + $0x5d0] sm:$0xff]
    %v1433 = vld [vmem:[#allocation3 + $0x5d8] sm:$0xff]
    %v1434 = vld [vmem:[#allocation3 + $0x5e0] sm:$0xff]
    %v1435 = vld [vmem:[#allocation3 + $0x5e8] sm:$0xff]
    %v1436 = vld [vmem:[#allocation3 + $0x5f0] sm:$0xff]
    %v1437 = vld [vmem:[#allocation3 + $0x5f8] sm:$0xff]
    %v1438 = vld [vmem:[#allocation3 + $0x600] sm:$0xff]
    %v1439 = vld [vmem:[#allocation3 + $0x608] sm:$0xff]
    %v1440 = vld [vmem:[#allocation3 + $0x610] sm:$0xff]
    %v1441 = vld [vmem:[#allocation3 + $0x618] sm:$0xff]
    %v1442 = vld [vmem:[#allocation3 + $0x620] sm:$0xff]
    %v1443 = vld [vmem:[#allocation3 + $0x628] sm:$0xff]
    %v1444 = vld [vmem:[#allocation3 + $0x630] sm:$0xff]
    %v1445 = vld [vmem:[#allocation3 + $0x638] sm:$0xff]
    %v1446 = vld [vmem:[#allocation3 + $0x640] sm:$0xff]
    %v1447 = vld [vmem:[#allocation3 + $0x648] sm:$0xff]
    %v1448 = vld [vmem:[#allocation3 + $0x650] sm:$0xff]
    %v1449 = vld [vmem:[#allocation3 + $0x658] sm:$0xff]
    %v1450 = vld [vmem:[#allocation3 + $0x660] sm:$0xff]
    %v1451 = vld [vmem:[#allocation3 + $0x668] sm:$0xff]
    %v1452 = vld [vmem:[#allocation3 + $0x670] sm:$0xff]
    %v1453 = vld [vmem:[#allocation3 + $0x678] sm:$0xff]
    %v1454 = vld [vmem:[#allocation3 + $0x680] sm:$0xff]
    %v1455 = vld [vmem:[#allocation3 + $0x688] sm:$0xff]
    %v1456 = vld [vmem:[#allocation3 + $0x690] sm:$0xff]
    %v1457 = vld [vmem:[#allocation3 + $0x698] sm:$0xff]
    %v1458 = vld [vmem:[#allocation3 + $0x6a0] sm:$0xff]
    %v1459 = vld [vmem:[#allocation3 + $0x6a8] sm:$0xff]
    %v1460 = vld [vmem:[#allocation3 + $0x6b0] sm:$0xff]
    %v1461 = vld [vmem:[#allocation3 + $0x6b8] sm:$0xff]
    %v1462 = vld [vmem:[#allocation3 + $0x6c0] sm:$0xff]
    %v1463 = vld [vmem:[#allocation3 + $0x6c8] sm:$0xff]
    %v1464 = vld [vmem:[#allocation3 + $0x6d0] sm:$0xff]
    %v1465 = vld [vmem:[#allocation3 + $0x6d8] sm:$0xff]
    %v1466 = vld [vmem:[#allocation3 + $0x6e0] sm:$0xff]
    %v1467 = vld [vmem:[#allocation3 + $0x6e8] sm:$0xff]
    %v1468 = vld [vmem:[#allocation3 + $0x6f0] sm:$0xff]
    %v1469 = vld [vmem:[#allocation3 + $0x6f8] sm:$0xff]
    %v1470 = vld [vmem:[#allocation3 + $0x700] sm:$0xff]
    %v1471 = vld [vmem:[#allocation3 + $0x708] sm:$0xff]
    %v1472 = vld [vmem:[#allocation3 + $0x710] sm:$0xff]
    %v1473 = vld [vmem:[#allocation3 + $0x718] sm:$0xff]
    %v1474 = vld [vmem:[#allocation3 + $0x720] sm:$0xff]
    %v1475 = vld [vmem:[#allocation3 + $0x728] sm:$0xff]
    %v1476 = vld [vmem:[#allocation3 + $0x730] sm:$0xff]
    %v1477 = vld [vmem:[#allocation3 + $0x738] sm:$0xff]
    %v1478 = vld [vmem:[#allocation3 + $0x740] sm:$0xff]
    %v1479 = vld [vmem:[#allocation3 + $0x748] sm:$0xff]
    %v1480 = vld [vmem:[#allocation3 + $0x750] sm:$0xff]
    %v1481 = vld [vmem:[#allocation3 + $0x758] sm:$0xff]
    %v1482 = vld [vmem:[#allocation3 + $0x760] sm:$0xff]
    %v1483 = vld [vmem:[#allocation3 + $0x768] sm:$0xff]
    %v1484 = vld [vmem:[#allocation3 + $0x770] sm:$0xff]
    %v1485 = vld [vmem:[#allocation3 + $0x778] sm:$0xff]
    %v1486 = vld [vmem:[#allocation3 + $0x780] sm:$0xff]
    %v1487 = vld [vmem:[#allocation3 + $0x788] sm:$0xff]
    %v1488 = vld [vmem:[#allocation3 + $0x790] sm:$0xff]
    %v1489 = vld [vmem:[#allocation3 + $0x798] sm:$0xff]
    %v1490 = vld [vmem:[#allocation3 + $0x7a0] sm:$0xff]
    %v1491 = vld [vmem:[#allocation3 + $0x7a8] sm:$0xff]
    %v1492 = vld [vmem:[#allocation3 + $0x7b0] sm:$0xff]
    %v1493 = vld [vmem:[#allocation3 + $0x7b8] sm:$0xff]
    %v1494 = vld [vmem:[#allocation3 + $0x7c0] sm:$0xff]
    %v1495 = vld [vmem:[#allocation3 + $0x7c8] sm:$0xff]
    %v1496 = vld [vmem:[#allocation3 + $0x7d0] sm:$0xff]
    %v1497 = vld [vmem:[#allocation3 + $0x7d8] sm:$0xff]
    %v1498 = vld [vmem:[#allocation3 + $0x7e0] sm:$0xff]
    %v1499 = vld [vmem:[#allocation3 + $0x7e8] sm:$0xff]
    %v1500 = vld [vmem:[#allocation3 + $0x7f0] sm:$0xff]
    %v1501 = vld [vmem:[#allocation3 + $0x7f8] sm:$0xff]
    %v1502 = vld [vmem:[%s12] sm:$0xf]
    %v1504 = vlaneseq
    %v1505 = vshrl.u32 %v1504, 7
    %v1506 = vsub.s32 0, %v1505
    %v1507 = vrot.slane %v1502, %v1506
    %v1508 = vlaneseq
    %v1509 = vshrl.u32 %v1508, 7
    %v1510 = vsub.s32 1, %v1509
    %v1511 = vrot.slane %v1502, %v1510
    %v1512 = vlaneseq
    %v1513 = vshrl.u32 %v1512, 7
    %v1514 = vsub.s32 2, %v1513
    %v1515 = vrot.slane %v1502, %v1514
    %v1516 = vlaneseq
    %v1517 = vshrl.u32 %v1516, 7
    %v1518 = vsub.s32 3, %v1517
    %v1519 = vrot.slane %v1502, %v1518
    %1524 = vmatprep.subr.mxu0 %v1247
    %1525 = vmatpush1.msra.mxu0 %v1246
    %1526 = vmatprep.subr.mxu0 %v1251
    %1527 = vmatpush1.msra.mxu0 %v1250
    %1528 = vmatprep.subr.mxu0 %v1255
    %1529 = vmatpush1.msra.mxu0 %v1254
    %1530 = vmatprep.subr.mxu0 %v1259
    %1531 = vmatpush1.msra.mxu0 %v1258
    %1532 = vmatprep.subr.mxu0 %v1263
    %1533 = vmatpush1.msra.mxu0 %v1262
    %1534 = vmatprep.subr.mxu0 %v1267
    %1535 = vmatpush1.msra.mxu0 %v1266
    %1536 = vmatprep.subr.mxu0 %v1271
    %1537 = vmatpush1.msra.mxu0 %v1270
    %1538 = vmatprep.subr.mxu0 %v1275
    %1539 = vmatpush1.msra.mxu0 %v1274
    %1540 = vmatprep.subr.mxu0 %v1279
    %1541 = vmatpush1.msra.mxu0 %v1278
    %1542 = vmatprep.subr.mxu0 %v1283
    %1543 = vmatpush1.msra.mxu0 %v1282
    %1544 = vmatprep.subr.mxu0 %v1287
    %1545 = vmatpush1.msra.mxu0 %v1286
    %1546 = vmatprep.subr.mxu0 %v1291
    %1547 = vmatpush1.msra.mxu0 %v1290
    %1548 = vmatprep.subr.mxu0 %v1295
    %1549 = vmatpush1.msra.mxu0 %v1294
    %1550 = vmatprep.subr.mxu0 %v1299
    %1551 = vmatpush1.msra.mxu0 %v1298
    %1552 = vmatprep.subr.mxu0 %v1303
    %1553 = vmatpush1.msra.mxu0 %v1302
    %1554 = vmatprep.subr.mxu0 %v1307
    %1555 = vmatpush1.msra.mxu0 %v1306
    %1556 = vmatprep.subr.mxu0 %v1311
    %1557 = vmatpush1.msra.mxu0 %v1310
    %1558 = vmatprep.subr.mxu0 %v1315
    %1559 = vmatpush1.msra.mxu0 %v1314
    %1560 = vmatprep.subr.mxu0 %v1319
    %1561 = vmatpush1.msra.mxu0 %v1318
    %1562 = vmatprep.subr.mxu0 %v1323
    %1563 = vmatpush1.msra.mxu0 %v1322
    %1564 = vmatprep.subr.mxu0 %v1327
    %1565 = vmatpush1.msra.mxu0 %v1326
    %1566 = vmatprep.subr.mxu0 %v1331
    %1567 = vmatpush1.msra.mxu0 %v1330
    %1568 = vmatprep.subr.mxu0 %v1335
    %1569 = vmatpush1.msra.mxu0 %v1334
    %1570 = vmatprep.subr.mxu0 %v1339
    %1571 = vmatpush1.msra.mxu0 %v1338
    %1572 = vmatprep.subr.mxu0 %v1343
    %1573 = vmatpush1.msra.mxu0 %v1342
    %1574 = vmatprep.subr.mxu0 %v1347
    %1575 = vmatpush1.msra.mxu0 %v1346
    %1576 = vmatprep.subr.mxu0 %v1351
    %1577 = vmatpush1.msra.mxu0 %v1350
    %1578 = vmatprep.subr.mxu0 %v1355
    %1579 = vmatpush1.msra.mxu0 %v1354
    %1580 = vmatprep.subr.mxu0 %v1359
    %1581 = vmatpush1.msra.mxu0 %v1358
    %1582 = vmatprep.subr.mxu0 %v1363
    %1583 = vmatpush1.msra.mxu0 %v1362
    %1584 = vmatprep.subr.mxu0 %v1367
    %1585 = vmatpush1.msra.mxu0 %v1366
    %1586 = vmatprep.subr.mxu0 %v1371
    %1587 = vmatpush1.msra.mxu0 %v1370
    %1588 = vmatprep.mubr.f32.mxu0 %v1239
    %1589 = vmatmul.mubr.f32.gmra.mrb[0].mxu0 %v1238
    %v1590 = vpop.f32.mrb[0].mxu0
    %v1591 = vadd.f32 %v1507, %v1590
    %v1592 = vpop.f32.mrb[0].mxu0
    %v1593 = vadd.f32 %v1511, %v1592
    %1594 = vmatprep.mubr.f32.mxu0 %v1243
    %1595 = vmatmul.mubr.f32.gmra.mrb[0].mxu0 %v1242
    %v1596 = vpop.f32.mrb[0].mxu0
    %v1597 = vadd.f32 %v1507, %v1596
    %v1598 = vpop.f32.mrb[0].mxu0
    %v1599 = vadd.f32 %v1511, %v1598
    %1600 = vdwg.mxu0
    %1601 = vmatprep.subr.mxu0 %v1375
    %1602 = vmatpush1.msra.mxu0 %v1374
    %1603 = vmatprep.subr.mxu0 %v1379
    %1604 = vmatpush1.msra.mxu0 %v1378
    %1605 = vmatprep.subr.mxu0 %v1383
    %1606 = vmatpush1.msra.mxu0 %v1382
    %1607 = vmatprep.subr.mxu0 %v1387
    %1608 = vmatpush1.msra.mxu0 %v1386
    %1609 = vmatprep.subr.mxu0 %v1391
    %1610 = vmatpush1.msra.mxu0 %v1390
    %1611 = vmatprep.subr.mxu0 %v1395
    %1612 = vmatpush1.msra.mxu0 %v1394
    %1613 = vmatprep.subr.mxu0 %v1399
    %1614 = vmatpush1.msra.mxu0 %v1398
    %1615 = vmatprep.subr.mxu0 %v1403
    %1616 = vmatpush1.msra.mxu0 %v1402
    %1617 = vmatprep.subr.mxu0 %v1407
    %1618 = vmatpush1.msra.mxu0 %v1406
    %1619 = vmatprep.subr.mxu0 %v1411
    %1620 = vmatpush1.msra.mxu0 %v1410
    %1621 = vmatprep.subr.mxu0 %v1415
    %1622 = vmatpush1.msra.mxu0 %v1414
    %1623 = vmatprep.subr.mxu0 %v1419
    %1624 = vmatpush1.msra.mxu0 %v1418
    %1625 = vmatprep.subr.mxu0 %v1423
    %1626 = vmatpush1.msra.mxu0 %v1422
    %1627 = vmatprep.subr.mxu0 %v1427
    %1628 = vmatpush1.msra.mxu0 %v1426
    %1629 = vmatprep.subr.mxu0 %v1431
    %1630 = vmatpush1.msra.mxu0 %v1430
    %1631 = vmatprep.subr.mxu0 %v1435
    %1632 = vmatpush1.msra.mxu0 %v1434
    %1633 = vmatprep.subr.mxu0 %v1439
    %1634 = vmatpush1.msra.mxu0 %v1438
    %1635 = vmatprep.subr.mxu0 %v1443
    %1636 = vmatpush1.msra.mxu0 %v1442
    %1637 = vmatprep.subr.mxu0 %v1447
    %1638 = vmatpush1.msra.mxu0 %v1446
    %1639 = vmatprep.subr.mxu0 %v1451
    %1640 = vmatpush1.msra.mxu0 %v1450
    %1641 = vmatprep.subr.mxu0 %v1455
    %1642 = vmatpush1.msra.mxu0 %v1454
    %1643 = vmatprep.subr.mxu0 %v1459
    %1644 = vmatpush1.msra.mxu0 %v1458
    %1645 = vmatprep.subr.mxu0 %v1463
    %1646 = vmatpush1.msra.mxu0 %v1462
    %1647 = vmatprep.subr.mxu0 %v1467
    %1648 = vmatpush1.msra.mxu0 %v1466
    %1649 = vmatprep.subr.mxu0 %v1471
    %1650 = vmatpush1.msra.mxu0 %v1470
    %1651 = vmatprep.subr.mxu0 %v1475
    %1652 = vmatpush1.msra.mxu0 %v1474
    %1653 = vmatprep.subr.mxu0 %v1479
    %1654 = vmatpush1.msra.mxu0 %v1478
    %1655 = vmatprep.subr.mxu0 %v1483
    %1656 = vmatpush1.msra.mxu0 %v1482
    %1657 = vmatprep.subr.mxu0 %v1487
    %1658 = vmatpush1.msra.mxu0 %v1486
    %1659 = vmatprep.subr.mxu0 %v1491
    %1660 = vmatpush1.msra.mxu0 %v1490
    %1661 = vmatprep.subr.mxu0 %v1495
    %1662 = vmatpush1.msra.mxu0 %v1494
    %1663 = vmatprep.subr.mxu0 %v1499
    %1664 = vmatpush1.msra.mxu0 %v1498
    %1665 = vmatprep.mubr.f32.mxu0 %v1241
    %1666 = vmatmul.mubr.f32.gmra.mrb[0].mxu0 %v1240
    %v1667 = vpop.f32.mrb[0].mxu0
    %v1668 = vadd.f32 %v1591, %v1667
    %v1669 = vpop.f32.mrb[0].mxu0
    %v1670 = vadd.f32 %v1593, %v1669
    %1671 = vmatprep.mubr.f32.mxu0 %v1245
    %1672 = vmatmul.mubr.f32.gmra.mrb[0].mxu0 %v1244
    %v1673 = vpop.f32.mrb[0].mxu0
    %v1674 = vadd.f32 %v1597, %v1673
    %v1675 = vpop.f32.mrb[0].mxu0
    %v1676 = vadd.f32 %v1599, %v1675
    %1677 = vdwg.mxu0
    %1678 = vmatprep.subr.mxu0 %v1249
    %1679 = vmatpush1.msra.mxu0 %v1248
    %1680 = vmatprep.subr.mxu0 %v1253
    %1681 = vmatpush1.msra.mxu0 %v1252
    %1682 = vmatprep.subr.mxu0 %v1257
    %1683 = vmatpush1.msra.mxu0 %v1256
    %1684 = vmatprep.subr.mxu0 %v1261
    %1685 = vmatpush1.msra.mxu0 %v1260
    %1686 = vmatprep.subr.mxu0 %v1265
    %1687 = vmatpush1.msra.mxu0 %v1264
    %1688 = vmatprep.subr.mxu0 %v1269
    %1689 = vmatpush1.msra.mxu0 %v1268
    %1690 = vmatprep.subr.mxu0 %v1273
    %1691 = vmatpush1.msra.mxu0 %v1272
    %1692 = vmatprep.subr.mxu0 %v1277
    %1693 = vmatpush1.msra.mxu0 %v1276
    %1694 = vmatprep.subr.mxu0 %v1281
    %1695 = vmatpush1.msra.mxu0 %v1280
    %1696 = vmatprep.subr.mxu0 %v1285
    %1697 = vmatpush1.msra.mxu0 %v1284
    %1698 = vmatprep.subr.mxu0 %v1289
    %1699 = vmatpush1.msra.mxu0 %v1288
    %1700 = vmatprep.subr.mxu0 %v1293
    %1701 = vmatpush1.msra.mxu0 %v1292
    %1702 = vmatprep.subr.mxu0 %v1297
    %1703 = vmatpush1.msra.mxu0 %v1296
    %1704 = vmatprep.subr.mxu0 %v1301
    %1705 = vmatpush1.msra.mxu0 %v1300
    %1706 = vmatprep.subr.mxu0 %v1305
    %1707 = vmatpush1.msra.mxu0 %v1304
    %1708 = vmatprep.subr.mxu0 %v1309
    %1709 = vmatpush1.msra.mxu0 %v1308
    %1710 = vmatprep.subr.mxu0 %v1313
    %1711 = vmatpush1.msra.mxu0 %v1312
    %1712 = vmatprep.subr.mxu0 %v1317
    %1713 = vmatpush1.msra.mxu0 %v1316
    %1714 = vmatprep.subr.mxu0 %v1321
    %1715 = vmatpush1.msra.mxu0 %v1320
    %1716 = vmatprep.subr.mxu0 %v1325
    %1717 = vmatpush1.msra.mxu0 %v1324
    %1718 = vmatprep.subr.mxu0 %v1329
    %1719 = vmatpush1.msra.mxu0 %v1328
    %1720 = vmatprep.subr.mxu0 %v1333
    %1721 = vmatpush1.msra.mxu0 %v1332
    %1722 = vmatprep.subr.mxu0 %v1337
    %1723 = vmatpush1.msra.mxu0 %v1336
    %1724 = vmatprep.subr.mxu0 %v1341
    %1725 = vmatpush1.msra.mxu0 %v1340
    %1726 = vmatprep.subr.mxu0 %v1345
    %1727 = vmatpush1.msra.mxu0 %v1344
    %1728 = vmatprep.subr.mxu0 %v1349
    %1729 = vmatpush1.msra.mxu0 %v1348
    %1730 = vmatprep.subr.mxu0 %v1353
    %1731 = vmatpush1.msra.mxu0 %v1352
    %1732 = vmatprep.subr.mxu0 %v1357
    %1733 = vmatpush1.msra.mxu0 %v1356
    %1734 = vmatprep.subr.mxu0 %v1361
    %1735 = vmatpush1.msra.mxu0 %v1360
    %1736 = vmatprep.subr.mxu0 %v1365
    %1737 = vmatpush1.msra.mxu0 %v1364
    %1738 = vmatprep.subr.mxu0 %v1369
    %1739 = vmatpush1.msra.mxu0 %v1368
    %1740 = vmatprep.subr.mxu0 %v1373
    %1741 = vmatpush1.msra.mxu0 %v1372
    %1742 = vmatprep.mubr.f32.mxu0 %v1239
    %1743 = vmatmul.mubr.f32.gmra.mrb[0].mxu0 %v1238
    %v1744 = vpop.f32.mrb[0].mxu0
    %v1745 = vadd.f32 %v1515, %v1744
    %v1746 = vpop.f32.mrb[0].mxu0
    %v1747 = vadd.f32 %v1519, %v1746
    %1748 = vmatprep.mubr.f32.mxu0 %v1243
    %1749 = vmatmul.mubr.f32.gmra.mrb[0].mxu0 %v1242
    %v1750 = vpop.f32.mrb[0].mxu0
    %v1751 = vadd.f32 %v1515, %v1750
    %v1752 = vpop.f32.mrb[0].mxu0
    %v1753 = vadd.f32 %v1519, %v1752
    %1754 = vdwg.mxu0
    %1755 = vmatprep.subr.mxu0 %v1377
    %1756 = vmatpush1.msra.mxu0 %v1376
    %1757 = vmatprep.subr.mxu0 %v1381
    %1758 = vmatpush1.msra.mxu0 %v1380
    %1759 = vmatprep.subr.mxu0 %v1385
    %1760 = vmatpush1.msra.mxu0 %v1384
    %1761 = vmatprep.subr.mxu0 %v1389
    %1762 = vmatpush1.msra.mxu0 %v1388
    %1763 = vmatprep.subr.mxu0 %v1393
    %1764 = vmatpush1.msra.mxu0 %v1392
    %1765 = vmatprep.subr.mxu0 %v1397
    %1766 = vmatpush1.msra.mxu0 %v1396
    %1767 = vmatprep.subr.mxu0 %v1401
    %1768 = vmatpush1.msra.mxu0 %v1400
    %1769 = vmatprep.subr.mxu0 %v1405
    %1770 = vmatpush1.msra.mxu0 %v1404
    %1771 = vmatprep.subr.mxu0 %v1409
    %1772 = vmatpush1.msra.mxu0 %v1408
    %1773 = vmatprep.subr.mxu0 %v1413
    %1774 = vmatpush1.msra.mxu0 %v1412
    %1775 = vmatprep.subr.mxu0 %v1417
    %1776 = vmatpush1.msra.mxu0 %v1416
    %1777 = vmatprep.subr.mxu0 %v1421
    %1778 = vmatpush1.msra.mxu0 %v1420
    %1779 = vmatprep.subr.mxu0 %v1425
    %1780 = vmatpush1.msra.mxu0 %v1424
    %1781 = vmatprep.subr.mxu0 %v1429
    %1782 = vmatpush1.msra.mxu0 %v1428
    %1783 = vmatprep.subr.mxu0 %v1433
    %1784 = vmatpush1.msra.mxu0 %v1432
    %1785 = vmatprep.subr.mxu0 %v1437
    %1786 = vmatpush1.msra.mxu0 %v1436
    %1787 = vmatprep.subr.mxu0 %v1441
    %1788 = vmatpush1.msra.mxu0 %v1440
    %1789 = vmatprep.subr.mxu0 %v1445
    %1790 = vmatpush1.msra.mxu0 %v1444
    %1791 = vmatprep.subr.mxu0 %v1449
    %1792 = vmatpush1.msra.mxu0 %v1448
    %1793 = vmatprep.subr.mxu0 %v1453
    %1794 = vmatpush1.msra.mxu0 %v1452
    %1795 = vmatprep.subr.mxu0 %v1457
    %1796 = vmatpush1.msra.mxu0 %v1456
    %1797 = vmatprep.subr.mxu0 %v1461
    %1798 = vmatpush1.msra.mxu0 %v1460
    %1799 = vmatprep.subr.mxu0 %v1465
    %1800 = vmatpush1.msra.mxu0 %v1464
    %1801 = vmatprep.subr.mxu0 %v1469
    %1802 = vmatpush1.msra.mxu0 %v1468
    %1803 = vmatprep.subr.mxu0 %v1473
    %1804 = vmatpush1.msra.mxu0 %v1472
    %1805 = vmatprep.subr.mxu0 %v1477
    %1806 = vmatpush1.msra.mxu0 %v1476
    %1807 = vmatprep.subr.mxu0 %v1481
    %1808 = vmatpush1.msra.mxu0 %v1480
    %1809 = vmatprep.subr.mxu0 %v1485
    %1810 = vmatpush1.msra.mxu0 %v1484
    %1811 = vmatprep.subr.mxu0 %v1489
    %1812 = vmatpush1.msra.mxu0 %v1488
    %1813 = vmatprep.subr.mxu0 %v1493
    %1814 = vmatpush1.msra.mxu0 %v1492
    %1815 = vmatprep.subr.mxu0 %v1497
    %1816 = vmatpush1.msra.mxu0 %v1496
    %1817 = vmatprep.subr.mxu0 %v1501
    %1818 = vmatpush1.msra.mxu0 %v1500
    %1819 = vmatprep.mubr.f32.mxu0 %v1241
    %1820 = vmatmul.mubr.f32.gmra.mrb[0].mxu0 %v1240
    %v1821 = vpop.f32.mrb[0].mxu0
    %v1822 = vadd.f32 %v1745, %v1821
    %v1823 = vpop.f32.mrb[0].mxu0
    %v1824 = vadd.f32 %v1747, %v1823
    %1825 = vmatprep.mubr.f32.mxu0 %v1245
    %1826 = vmatmul.mubr.f32.gmra.mrb[0].mxu0 %v1244
    %v1827 = vpop.f32.mrb[0].mxu0
    %v1828 = vadd.f32 %v1751, %v1827
    %v1829 = vpop.f32.mrb[0].mxu0
    %v1830 = vadd.f32 %v1753, %v1829
    %1831 = vdwg.mxu0
    %v1832 = vmul.f32 %v1668, 0.5
    %v1833 = vmul.f32 %v1670, 0.5
    %v1834 = vmul.f32 %v1822, 0.5
    %v1835 = vmul.f32 %v1824, 0.5
    %v1836 = vmul.f32 %v1674, 0.5
    %v1837 = vmul.f32 %v1676, 0.5
    %v1838 = vmul.f32 %v1828, 0.5
    %v1839 = vmul.f32 %v1830, 0.5
    %v1840 = vmul.f32 %v1668, 0.044715
    %v1841 = vmul.f32 %v1670, 0.044715
    %v1842 = vmul.f32 %v1822, 0.044715
    %v1843 = vmul.f32 %v1824, 0.044715
    %v1844 = vmul.f32 %v1674, 0.044715
    %v1845 = vmul.f32 %v1676, 0.044715
    %v1846 = vmul.f32 %v1828, 0.044715
    %v1847 = vmul.f32 %v1830, 0.044715
    %v1848 = vmul.f32 %v1840, %v1668
    %v1849 = vmul.f32 %v1841, %v1670
    %v1850 = vmul.f32 %v1842, %v1822
    %v1851 = vmul.f32 %v1843, %v1824
    %v1852 = vmul.f32 %v1844, %v1674
    %v1853 = vmul.f32 %v1845, %v1676
    %v1854 = vmul.f32 %v1846, %v1828
    %v1855 = vmul.f32 %v1847, %v1830
    %v1856 = vmul.f32 %v1848, %v1668
    %v1857 = vmul.f32 %v1849, %v1670
    %v1858 = vmul.f32 %v1850, %v1822
    %v1859 = vmul.f32 %v1851, %v1824
    %v1860 = vmul.f32 %v1852, %v1674
    %v1861 = vmul.f32 %v1853, %v1676
    %v1862 = vmul.f32 %v1854, %v1828
    %v1863 = vmul.f32 %v1855, %v1830
    %v1864 = vadd.f32 %v1668, %v1856
    %v1865 = vadd.f32 %v1670, %v1857
    %v1866 = vadd.f32 %v1822, %v1858
    %v1867 = vadd.f32 %v1824, %v1859
    %v1868 = vadd.f32 %v1674, %v1860
    %v1869 = vadd.f32 %v1676, %v1861
    %v1870 = vadd.f32 %v1828, %v1862
    %v1871 = vadd.f32 %v1830, %v1863
    %v1872 = vmul.f32 %v1864, 0.7978846
    %v1873 = vmul.f32 %v1865, 0.7978846
    %v1874 = vmul.f32 %v1866, 0.7978846
    %v1875 = vmul.f32 %v1867, 0.7978846
    %v1876 = vmul.f32 %v1868, 0.7978846
    %v1877 = vmul.f32 %v1869, 0.7978846
    %v1878 = vmul.f32 %v1870, 0.7978846
    %v1879 = vmul.f32 %v1871, 0.7978846
    %v1880 = vtanh.pop %v1872
    %v1881 = vtanh.pop %v1873
    %v1882 = vtanh.pop %v1874
    %v1883 = vtanh.pop %v1875
    %v1884 = vtanh.pop %v1876
    %v1885 = vtanh.pop %v1877
    %v1886 = vtanh.pop %v1878
    %v1887 = vtanh.pop %v1879
    %v1888 = vadd.f32 %v1880, 1.0
    %v1889 = vadd.f32 %v1881, 1.0
    %v1890 = vadd.f32 %v1882, 1.0
    %v1891 = vadd.f32 %v1883, 1.0
    %v1892 = vadd.f32 %v1884, 1.0
    %v1893 = vadd.f32 %v1885, 1.0
    %v1894 = vadd.f32 %v1886, 1.0
    %v1895 = vadd.f32 %v1887, 1.0
    %v1896 = vmul.f32 %v1832, %v1888
    %v1897 = vmul.f32 %v1833, %v1889
    %v1898 = vmul.f32 %v1834, %v1890
    %v1899 = vmul.f32 %v1835, %v1891
    %v1900 = vmul.f32 %v1836, %v1892
    %v1901 = vmul.f32 %v1837, %v1893
    %v1902 = vmul.f32 %v1838, %v1894
    %v1903 = vmul.f32 %v1839, %v1895
    %v1904 = vld [vmem:[%s13] sm:$0xff]
    %v1905 = vld [vmem:[%s13 + $0x8] sm:$0xff]
    %v1906 = vld [vmem:[%s13 + $0x10] sm:$0xff]
    %v1907 = vld [vmem:[%s13 + $0x18] sm:$0xff]
    %v1908 = vld [vmem:[%s13 + $0x20] sm:$0xff]
    %v1909 = vld [vmem:[%s13 + $0x28] sm:$0xff]
    %v1910 = vld [vmem:[%s13 + $0x30] sm:$0xff]
    %v1911 = vld [vmem:[%s13 + $0x38] sm:$0xff]
    %v1912 = vld [vmem:[%s13 + $0x40] sm:$0xff]
    %v1913 = vld [vmem:[%s13 + $0x48] sm:$0xff]
    %v1914 = vld [vmem:[%s13 + $0x50] sm:$0xff]
    %v1915 = vld [vmem:[%s13 + $0x58] sm:$0xff]
    %v1916 = vld [vmem:[%s13 + $0x60] sm:$0xff]
    %v1917 = vld [vmem:[%s13 + $0x68] sm:$0xff]
    %v1918 = vld [vmem:[%s13 + $0x70] sm:$0xff]
    %v1919 = vld [vmem:[%s13 + $0x78] sm:$0xff]
    %v1920 = vld [vmem:[%s13 + $0x80] sm:$0xff]
    %v1921 = vld [vmem:[%s13 + $0x88] sm:$0xff]
    %v1922 = vld [vmem:[%s13 + $0x90] sm:$0xff]
    %v1923 = vld [vmem:[%s13 + $0x98] sm:$0xff]
    %v1924 = vld [vmem:[%s13 + $0xa0] sm:$0xff]
    %v1925 = vld [vmem:[%s13 + $0xa8] sm:$0xff]
    %v1926 = vld [vmem:[%s13 + $0xb0] sm:$0xff]
    %v1927 = vld [vmem:[%s13 + $0xb8] sm:$0xff]
    %v1928 = vld [vmem:[%s13 + $0xc0] sm:$0xff]
    %v1929 = vld [vmem:[%s13 + $0xc8] sm:$0xff]
    %v1930 = vld [vmem:[%s13 + $0xd0] sm:$0xff]
    %v1931 = vld [vmem:[%s13 + $0xd8] sm:$0xff]
    %v1932 = vld [vmem:[%s13 + $0xe0] sm:$0xff]
    %v1933 = vld [vmem:[%s13 + $0xe8] sm:$0xff]
    %v1934 = vld [vmem:[%s13 + $0xf0] sm:$0xff]
    %v1935 = vld [vmem:[%s13 + $0xf8] sm:$0xff]
    %v1936 = vld [vmem:[%s13 + $0x100] sm:$0xff]
    %v1937 = vld [vmem:[%s13 + $0x108] sm:$0xff]
    %v1938 = vld [vmem:[%s13 + $0x110] sm:$0xff]
    %v1939 = vld [vmem:[%s13 + $0x118] sm:$0xff]
    %v1940 = vld [vmem:[%s13 + $0x120] sm:$0xff]
    %v1941 = vld [vmem:[%s13 + $0x128] sm:$0xff]
    %v1942 = vld [vmem:[%s13 + $0x130] sm:$0xff]
    %v1943 = vld [vmem:[%s13 + $0x138] sm:$0xff]
    %v1944 = vld [vmem:[%s13 + $0x140] sm:$0xff]
    %v1945 = vld [vmem:[%s13 + $0x148] sm:$0xff]
    %v1946 = vld [vmem:[%s13 + $0x150] sm:$0xff]
    %v1947 = vld [vmem:[%s13 + $0x158] sm:$0xff]
    %v1948 = vld [vmem:[%s13 + $0x160] sm:$0xff]
    %v1949 = vld [vmem:[%s13 + $0x168] sm:$0xff]
    %v1950 = vld [vmem:[%s13 + $0x170] sm:$0xff]
    %v1951 = vld [vmem:[%s13 + $0x178] sm:$0xff]
    %v1952 = vld [vmem:[%s13 + $0x180] sm:$0xff]
    %v1953 = vld [vmem:[%s13 + $0x188] sm:$0xff]
    %v1954 = vld [vmem:[%s13 + $0x190] sm:$0xff]
    %v1955 = vld [vmem:[%s13 + $0x198] sm:$0xff]
    %v1956 = vld [vmem:[%s13 + $0x1a0] sm:$0xff]
    %v1957 = vld [vmem:[%s13 + $0x1a8] sm:$0xff]
    %v1958 = vld [vmem:[%s13 + $0x1b0] sm:$0xff]
    %v1959 = vld [vmem:[%s13 + $0x1b8] sm:$0xff]
    %v1960 = vld [vmem:[%s13 + $0x1c0] sm:$0xff]
    %v1961 = vld [vmem:[%s13 + $0x1c8] sm:$0xff]
    %v1962 = vld [vmem:[%s13 + $0x1d0] sm:$0xff]
    %v1963 = vld [vmem:[%s13 + $0x1d8] sm:$0xff]
    %v1964 = vld [vmem:[%s13 + $0x1e0] sm:$0xff]
    %v1965 = vld [vmem:[%s13 + $0x1e8] sm:$0xff]
    %v1966 = vld [vmem:[%s13 + $0x1f0] sm:$0xff]
    %v1967 = vld [vmem:[%s13 + $0x1f8] sm:$0xff]
    %v1968 = vld [vmem:[%s14] sm:$0x1]
    %v1970 = vlaneseq
    %v1971 = vshrl.u32 %v1970, 7
    %v1972 = vsub.s32 0, %v1971
    %v1973 = vrot.slane %v1968, %v1972
    %1975 = vmatprep.subr.mxu0 0.0
    %1976 = vmatpush1.msra.mxu0 %v1904
    %1977 = vmatprep.subr.mxu0 0.0
    %1978 = vmatpush1.msra.mxu0 %v1905
    %1979 = vmatprep.subr.mxu0 0.0
    %1980 = vmatpush1.msra.mxu0 %v1906
    %1981 = vmatprep.subr.mxu0 0.0
    %1982 = vmatpush1.msra.mxu0 %v1907
    %1983 = vmatprep.subr.mxu0 0.0
    %1984 = vmatpush1.msra.mxu0 %v1908
    %1985 = vmatprep.subr.mxu0 0.0
    %1986 = vmatpush1.msra.mxu0 %v1909
    %1987 = vmatprep.subr.mxu0 0.0
    %1988 = vmatpush1.msra.mxu0 %v1910
    %1989 = vmatprep.subr.mxu0 0.0
    %1990 = vmatpush1.msra.mxu0 %v1911
    %1991 = vmatprep.subr.mxu0 0.0
    %1992 = vmatpush1.msra.mxu0 %v1912
    %1993 = vmatprep.subr.mxu0 0.0
    %1994 = vmatpush1.msra.mxu0 %v1913
    %1995 = vmatprep.subr.mxu0 0.0
    %1996 = vmatpush1.msra.mxu0 %v1914
    %1997 = vmatprep.subr.mxu0 0.0
    %1998 = vmatpush1.msra.mxu0 %v1915
    %1999 = vmatprep.subr.mxu0 0.0
    %2000 = vmatpush1.msra.mxu0 %v1916
    %2001 = vmatprep.subr.mxu0 0.0
    %2002 = vmatpush1.msra.mxu0 %v1917
    %2003 = vmatprep.subr.mxu0 0.0
    %2004 = vmatpush1.msra.mxu0 %v1918
    %2005 = vmatprep.subr.mxu0 0.0
    %2006 = vmatpush1.msra.mxu0 %v1919
    %2007 = vmatprep.subr.mxu0 0.0
    %2008 = vmatpush1.msra.mxu0 %v1920
    %2009 = vmatprep.subr.mxu0 0.0
    %2010 = vmatpush1.msra.mxu0 %v1921
    %2011 = vmatprep.subr.mxu0 0.0
    %2012 = vmatpush1.msra.mxu0 %v1922
    %2013 = vmatprep.subr.mxu0 0.0
    %2014 = vmatpush1.msra.mxu0 %v1923
    %2015 = vmatprep.subr.mxu0 0.0
    %2016 = vmatpush1.msra.mxu0 %v1924
    %2017 = vmatprep.subr.mxu0 0.0
    %2018 = vmatpush1.msra.mxu0 %v1925
    %2019 = vmatprep.subr.mxu0 0.0
    %2020 = vmatpush1.msra.mxu0 %v1926
    %2021 = vmatprep.subr.mxu0 0.0
    %2022 = vmatpush1.msra.mxu0 %v1927
    %2023 = vmatprep.subr.mxu0 0.0
    %2024 = vmatpush1.msra.mxu0 %v1928
    %2025 = vmatprep.subr.mxu0 0.0
    %2026 = vmatpush1.msra.mxu0 %v1929
    %2027 = vmatprep.subr.mxu0 0.0
    %2028 = vmatpush1.msra.mxu0 %v1930
    %2029 = vmatprep.subr.mxu0 0.0
    %2030 = vmatpush1.msra.mxu0 %v1931
    %2031 = vmatprep.subr.mxu0 0.0
    %2032 = vmatpush1.msra.mxu0 %v1932
    %2033 = vmatprep.subr.mxu0 0.0
    %2034 = vmatpush1.msra.mxu0 %v1933
    %2035 = vmatprep.subr.mxu0 0.0
    %2036 = vmatpush1.msra.mxu0 %v1934
    %2037 = vmatprep.subr.mxu0 0.0
    %2038 = vmatpush1.msra.mxu0 %v1935
    %2039 = vmatprep.mubr.f32.mxu0 %v1897
    %2040 = vmatmul.mubr.f32.gmra.mrb[0].mxu0 %v1896
    %v2041 = vpop.f32.mrb[0].mxu0
    %v2042 = vadd.f32 %v1973, %v2041
    %v2043 = vpop.f32.mrb[0].mxu0
    %2044 = vmatprep.mubr.f32.mxu0 %v1901
    %2045 = vmatmul.mubr.f32.gmra.mrb[0].mxu0 %v1900
    %v2046 = vpop.f32.mrb[0].mxu0
    %v2047 = vadd.f32 %v1973, %v2046
    %v2048 = vpop.f32.mrb[0].mxu0
    %2049 = vdwg.mxu0
    %2050 = vmatprep.subr.mxu0 0.0
    %2051 = vmatpush1.msra.mxu0 %v1936
    %2052 = vmatprep.subr.mxu0 0.0
    %2053 = vmatpush1.msra.mxu0 %v1937
    %2054 = vmatprep.subr.mxu0 0.0
    %2055 = vmatpush1.msra.mxu0 %v1938
    %2056 = vmatprep.subr.mxu0 0.0
    %2057 = vmatpush1.msra.mxu0 %v1939
    %2058 = vmatprep.subr.mxu0 0.0
    %2059 = vmatpush1.msra.mxu0 %v1940
    %2060 = vmatprep.subr.mxu0 0.0
    %2061 = vmatpush1.msra.mxu0 %v1941
    %2062 = vmatprep.subr.mxu0 0.0
    %2063 = vmatpush1.msra.mxu0 %v1942
    %2064 = vmatprep.subr.mxu0 0.0
    %2065 = vmatpush1.msra.mxu0 %v1943
    %2066 = vmatprep.subr.mxu0 0.0
    %2067 = vmatpush1.msra.mxu0 %v1944
    %2068 = vmatprep.subr.mxu0 0.0
    %2069 = vmatpush1.msra.mxu0 %v1945
    %2070 = vmatprep.subr.mxu0 0.0
    %2071 = vmatpush1.msra.mxu0 %v1946
    %2072 = vmatprep.subr.mxu0 0.0
    %2073 = vmatpush1.msra.mxu0 %v1947
    %2074 = vmatprep.subr.mxu0 0.0
    %2075 = vmatpush1.msra.mxu0 %v1948
    %2076 = vmatprep.subr.mxu0 0.0
    %2077 = vmatpush1.msra.mxu0 %v1949
    %2078 = vmatprep.subr.mxu0 0.0
    %2079 = vmatpush1.msra.mxu0 %v1950
    %2080 = vmatprep.subr.mxu0 0.0
    %2081 = vmatpush1.msra.mxu0 %v1951
    %2082 = vmatprep.subr.mxu0 0.0
    %2083 = vmatpush1.msra.mxu0 %v1952
    %2084 = vmatprep.subr.mxu0 0.0
    %2085 = vmatpush1.msra.mxu0 %v1953
    %2086 = vmatprep.subr.mxu0 0.0
    %2087 = vmatpush1.msra.mxu0 %v1954
    %2088 = vmatprep.subr.mxu0 0.0
    %2089 = vmatpush1.msra.mxu0 %v1955
    %2090 = vmatprep.subr.mxu0 0.0
    %2091 = vmatpush1.msra.mxu0 %v1956
    %2092 = vmatprep.subr.mxu0 0.0
    %2093 = vmatpush1.msra.mxu0 %v1957
    %2094 = vmatprep.subr.mxu0 0.0
    %2095 = vmatpush1.msra.mxu0 %v1958
    %2096 = vmatprep.subr.mxu0 0.0
    %2097 = vmatpush1.msra.mxu0 %v1959
    %2098 = vmatprep.subr.mxu0 0.0
    %2099 = vmatpush1.msra.mxu0 %v1960
    %2100 = vmatprep.subr.mxu0 0.0
    %2101 = vmatpush1.msra.mxu0 %v1961
    %2102 = vmatprep.subr.mxu0 0.0
    %2103 = vmatpush1.msra.mxu0 %v1962
    %2104 = vmatprep.subr.mxu0 0.0
    %2105 = vmatpush1.msra.mxu0 %v1963
    %2106 = vmatprep.subr.mxu0 0.0
    %2107 = vmatpush1.msra.mxu0 %v1964
    %2108 = vmatprep.subr.mxu0 0.0
    %2109 = vmatpush1.msra.mxu0 %v1965
    %2110 = vmatprep.subr.mxu0 0.0
    %2111 = vmatpush1.msra.mxu0 %v1966
    %2112 = vmatprep.subr.mxu0 0.0
    %2113 = vmatpush1.msra.mxu0 %v1967
    %2114 = vmatprep.mubr.f32.mxu0 %v1899
    %2115 = vmatmul.mubr.f32.gmra.mrb[0].mxu0 %v1898
    %v2116 = vpop.f32.mrb[0].mxu0
    %v2117 = vadd.f32 %v2042, %v2116
    %v2118 = vpop.f32.mrb[0].mxu0
    %2119 = vmatprep.mubr.f32.mxu0 %v1903
    %2120 = vmatmul.mubr.f32.gmra.mrb[0].mxu0 %v1902
    %v2121 = vpop.f32.mrb[0].mxu0
    %v2122 = vadd.f32 %v2047, %v2121
    %v2123 = vpop.f32.mrb[0].mxu0
    %2124 = vdwg.mxu0
    %2125 = vst [vmem:[%s15] sm:$0xff] %v2117
    %2126 = vst [vmem:[%s15 + $0x8] sm:$0xff] %v2122
    // Predicated region
    $region66: #{high_order_attention.1} parent=1 // pred_check
      _
    $region67: #{high_order_attention.1} parent=1 // pred_check_branch
      %2128 = sbr.rel (0) target = $region69
    $region68: #{high_order_attention.1} parent=1 // pred_region
      _
    $region69: #{high_order_attention.1} parent=1 // pred_fallthru
      _
    // Predicated region
    $region70: #{high_order_attention.1} parent=1 // pred_check
      _
    $region71: #{high_order_attention.1} parent=1 // pred_check_branch
      %2130 = sbr.rel (0) target = $region73
    $region72: #{high_order_attention.1} parent=1 // pred_region
      _
    $region73: #{high_order_attention.1} parent=1 // pred_fallthru
      _
    %2131 = vsyncpa [#allocation4], 1

</llo_original>
